<compile_context>
chip_gen: v7x
topology: tpu7x:2x2x1
jax: 0.10.0
libtpu: 0.0.40
codegen_flags: <defaults>
</compile_context>

<pallas_src>
import math

import jax
import jax.numpy as jnp
from jax.experimental import pallas as pl
from jax.experimental.pallas import tpu as pltpu


# ----------------------------- small math helpers ---------------------------

def _layernorm(x, g, b, eps):
    # PyTorch nn.LayerNorm: biased variance over the last dim.
    mu = jnp.mean(x, axis=-1, keepdims=True)
    var = jnp.mean((x - mu) ** 2, axis=-1, keepdims=True)
    return (x - mu) * jax.lax.rsqrt(var + eps) * g + b


def _silu(x):
    return x * jax.nn.sigmoid(x)


def _round_up(a, b):
    return (a + b - 1) // b * b


# --------------------------- packed-parameter layout -------------------------
#
# One f32 slab of shape [total_rows, COLS], COLS = max(C, T, M).  Matrices are
# stored row-contiguous (zero-padded on the right); small vectors are grouped
# 8 rows at a time so every segment offset stays sublane(8)-aligned.

def _param_layout(C, T, M, R):
    COLS = max(C, T, M)
    layout = {}
    off = 0

    def add(name, rows):
        nonlocal off
        layout[name] = off
        off += rows

    add('ip_w', C)             # input_proj weight                 [C, C]
    add('te_w1', C)            # time_embed[0] weight              [C, T]
    add('te_w2', T)            # time_embed[2] weight              [T, T]
    add('out_w', C)            # out head weight (zero_module)     [C, C]
    add('head_vecs', 8)        # rows: ip_b, te_b1, te_b2, out_ln_g, out_ln_b, out_b
    for r in range(R):
        add(f'fused_w_{r}', C + T)   # concat(in_layers.W, emb_layers.W) -> [C+T, M]
        add(f'l2_w_{r}', M)          # out_layers zero_module Linear     -> [M, C]
        add(f'blk_vecs_{r}', 8)      # rows: ln1_g, ln1_b, fused_b, ln2_g, ln2_b, l2_b
    return layout, off, COLS


# --------------------------------- kernel ------------------------------------

def make_simple_mlp_kernel(TB, C, T, M, R, layout):
    f32 = jnp.float32
    half = C // 2

    def kernel(x_ref, ts_ref, p_ref, o_ref):
        def mat(name, rows, cols):
            return p_ref[pl.ds(layout[name], rows), :cols]

        def vgroup(name):
            return p_ref[pl.ds(layout[name], 8), :]

        hv = vgroup('head_vecs')                    # [8, COLS]
        ip_b = hv[0:1, :C]
        te_b1 = hv[1:2, :T]
        te_b2 = hv[2:3, :T]
        out_ln_g = hv[3:4, :C]
        out_ln_b = hv[4:5, :C]
        out_b = hv[5:6, :C]

        x = x_ref[...]                                              # [TB, C]

        # --- sinusoidal timestep embedding (dim = C), fused in-kernel -------
        # emb[:, j] = cos(t * f_j) for j < half, sin(t * f_{j-half}) otherwise.
        # Frequencies computed on a single (1, C) row, broadcast over batch.
        idx = jax.lax.broadcasted_iota(jnp.int32, (1, C), 1)
        is_cos = idx < half
        k = jnp.where(is_cos, idx, idx - half).astype(f32)
        freqs = jnp.exp(k * (-math.log(10000.0) / half))            # [1, C]
        args = ts_ref[...] * freqs                                  # [TB, C]
        t_emb = jnp.where(is_cos, jnp.cos(args), jnp.sin(args))
        if C % 2:  # torch appends a zero column for odd dim
            t_emb = jnp.where(idx < 2 * half, t_emb, 0.0)

        # --- input_proj: Linear(C, C) ----------------------------------------
        x = jnp.dot(x, mat('ip_w', C, C), preferred_element_type=f32) + ip_b

        # --- time_embed: Linear(C, T) -> SiLU -> Linear(T, T) ----------------
        e = jnp.dot(t_emb, mat('te_w1', C, T), preferred_element_type=f32) + te_b1
        e = _silu(e)
        e = jnp.dot(e, mat('te_w2', T, T), preferred_element_type=f32) + te_b2
        se = _silu(e)            # hoisted: loop-invariant across res blocks

        # --- residual blocks (use_context=False), statically unrolled --------
        for r in range(R):
            bv = vgroup(f'blk_vecs_{r}')
            ln1_g, ln1_b = bv[0:1, :C], bv[1:2, :C]
            fused_b = bv[2:3, :M]
            ln2_g, ln2_b = bv[3:4, :M], bv[4:5, :M]
            l2_b = bv[5:6, :C]

            # in_layers (LN -> SiLU) and emb_layers (SiLU) fused into one matmul:
            #   h@W1 + se@W2 + (b1+b2) == concat([h, se]) @ [[W1],[W2]] + fused_b
            h = _silu(_layernorm(x, ln1_g, ln1_b, 1e-5))            # [TB, C]
            hcat = jnp.concatenate([h, se], axis=-1)                # [TB, C+T]
            h = jnp.dot(hcat, mat(f'fused_w_{r}', C + T, M),
                        preferred_element_type=f32) + fused_b       # [TB, M]
            # out_layers: LN -> SiLU -> Dropout(p=0, identity) -> zero Linear
            h = _silu(_layernorm(h, ln2_g, ln2_b, 1e-5))
            h = jnp.dot(h, mat(f'l2_w_{r}', M, C),
                        preferred_element_type=f32) + l2_b          # [TB, C]
            x = x + h

        # --- out head: LayerNorm(eps=1e-6) -> SiLU -> zero Linear -------------
        y = _silu(_layernorm(x, out_ln_g, out_ln_b, 1e-6))
        y = jnp.dot(y, mat('out_w', C, C), preferred_element_type=f32) + out_b
        o_ref[...] = y

    return kernel


# --------------------------------- glue --------------------------------------

def simple_mlp_forward(x, timesteps, packed_params, C, T, M, R, batch_tile=128):
    N = x.shape[0]
    # TODO(synk): pad to 8-aligned dims for fully general channel counts.
    assert C % 8 == 0 and T % 8 == 0 and M % 8 == 0 and C % 2 == 0, \
        "kernel assumes 8-aligned (and even) channel dims"
    x2 = x.reshape(N, C).astype(jnp.float32)          # explicit; x.squeeze() is unsafe at N==1
    ts = timesteps.reshape(N, 1).astype(jnp.float32)

    # Batch tiling: TB rows per grid step (8-sublane aligned); pad & slice back.
    TB = min(batch_tile, _round_up(N, 8))
    Npad = _round_up(N, TB)
    if Npad != N:
        x2 = jnp.pad(x2, ((0, Npad - N), (0, 0)))
        ts = jnp.pad(ts, ((0, Npad - N), (0, 0)))

    layout, total_rows, COLS = _param_layout(C, T, M, R)
    slab_bytes = total_rows * COLS * 4
    vmem_limit = int(min(64 << 20, max(32 << 20, 3 * slab_bytes + (8 << 20))))

    out = pl.pallas_call(
        make_simple_mlp_kernel(TB, C, T, M, R, layout),
        out_shape=jax.ShapeDtypeStruct((Npad, C), jnp.float32),
        grid=(Npad // TB,),
        in_specs=[
            pl.BlockSpec((TB, C), lambda i: (i, 0)),
            pl.BlockSpec((TB, 1), lambda i: (i, 0)),
            # parameter slab: constant block index -> fetched once, stays resident
            pl.BlockSpec((total_rows, COLS), lambda i: (0, 0)),
        ],
        out_specs=pl.BlockSpec((TB, C), lambda i: (i, 0)),
        compiler_params=pltpu.CompilerParams(
            dimension_semantics=("parallel",),
            vmem_limit_bytes=vmem_limit),
    )(x2, ts, packed_params)
    return out[:N]


def init_params(key, C, T, M, R, zero_init=True):
    """nn.Linear default init; zero_init=True reproduces zero_module()."""
    def linear(k, fan_in, fan_out, zero=False):
        if zero:
            return (jnp.zeros((fan_in, fan_out), jnp.float32),
                    jnp.zeros((fan_out,), jnp.float32))
        k1, k2 = jax.random.split(k)
        bound = 1.0 / math.sqrt(fan_in)
        w = jax.random.uniform(k1, (fan_in, fan_out), jnp.float32, -bound, bound)
        b = jax.random.uniform(k2, (fan_out,), jnp.float32, -bound, bound)
        return w, b

    keys = jax.random.split(key, 4 + 3 * R)
    p = {}
    p['ip_w'], p['ip_b'] = linear(keys[0], C, C)
    p['te_w1'], p['te_b1'] = linear(keys[1], C, T)
    p['te_w2'], p['te_b2'] = linear(keys[2], T, T)
    p['out_ln_g'] = jnp.ones((C,), jnp.float32)
    p['out_ln_b'] = jnp.zeros((C,), jnp.float32)
    p['out_w'], p['out_b'] = linear(keys[3], C, C, zero=zero_init)     # zero_module
    blocks = []
    for r in range(R):
        l1_w, l1_b = linear(keys[4 + 3 * r], C, M)
        emb_w, emb_b = linear(keys[5 + 3 * r], T, M)
        l2_w, l2_b = linear(keys[6 + 3 * r], M, C, zero=zero_init)     # zero_module
        blocks.append(dict(
            ln1_g=jnp.ones((C,), jnp.float32), ln1_b=jnp.zeros((C,), jnp.float32),
            l1_w=l1_w, l1_b=l1_b, emb_w=emb_w, emb_b=emb_b,
            ln2_g=jnp.ones((M,), jnp.float32), ln2_b=jnp.zeros((M,), jnp.float32),
            l2_w=l2_w, l2_b=l2_b))
    p['blocks'] = blocks
    return p


def pack_params(p, C, T, M, R):
    """Pack all weights/biases/LN params into one [rows, COLS] f32 slab."""
    layout, total_rows, COLS = _param_layout(C, T, M, R)
    slab = jnp.zeros((total_rows, COLS), jnp.float32)

    def put(s, off, a):
        a = jnp.asarray(a, jnp.float32)
        if a.ndim == 1:
            a = a[None, :]
        r, c = a.shape
        return s.at[off:off + r, :c].set(a)

    slab = put(slab, layout['ip_w'], p['ip_w'])
    slab = put(slab, layout['te_w1'], p['te_w1'])
    slab = put(slab, layout['te_w2'], p['te_w2'])
    slab = put(slab, layout['out_w'], p['out_w'])
    hv = layout['head_vecs']
    slab = put(slab, hv + 0, p['ip_b'])
    slab = put(slab, hv + 1, p['te_b1'])
    slab = put(slab, hv + 2, p['te_b2'])
    slab = put(slab, hv + 3, p['out_ln_g'])
    slab = put(slab, hv + 4, p['out_ln_b'])
    slab = put(slab, hv + 5, p['out_b'])
    for r, blk in enumerate(p['blocks']):
        fused_w = jnp.concatenate([blk['l1_w'], blk['emb_w']], axis=0)   # [C+T, M]
        fused_b = blk['l1_b'] + blk['emb_b']
        slab = put(slab, layout[f'fused_w_{r}'], fused_w)
        slab = put(slab, layout[f'l2_w_{r}'], blk['l2_w'])
        bv = layout[f'blk_vecs_{r}']
        slab = put(slab, bv + 0, blk['ln1_g'])
        slab = put(slab, bv + 1, blk['ln1_b'])
        slab = put(slab, bv + 2, fused_b)
        slab = put(slab, bv + 3, blk['ln2_g'])
        slab = put(slab, bv + 4, blk['ln2_b'])
        slab = put(slab, bv + 5, blk['l2_b'])
    return slab


# --------------------------- pure-JAX reference -------------------------------

def timestep_embedding(timesteps, dim, max_period=10000):
    half = dim // 2
    freqs = jnp.exp(
        -math.log(max_period) * jnp.arange(half, dtype=jnp.float32) / half)
    args = timesteps[:, None].astype(jnp.float32) * freqs[None]
    emb = jnp.concatenate([jnp.cos(args), jnp.sin(args)], axis=-1)
    if dim % 2:
        emb = jnp.concatenate([emb, jnp.zeros_like(emb[:, :1])], axis=-1)
    return emb


def _reference(x, timesteps, p, C, R):
    N = x.shape[0]
    xx = x.reshape(N, C).astype(jnp.float32)
    xx = xx @ p['ip_w'] + p['ip_b']
    e = timestep_embedding(timesteps, C) @ p['te_w1'] + p['te_b1']
    e = _silu(e)
    e = e @ p['te_w2'] + p['te_b2']
    for blk in p['blocks']:
        h = _silu(_layernorm(xx, blk['ln1_g'], blk['ln1_b'], 1e-5)) @ blk['l1_w'] + blk['l1_b']
        h = h + (_silu(e) @ blk['emb_w'] + blk['emb_b'])
        h = _silu(_layernorm(h, blk['ln2_g'], blk['ln2_b'], 1e-5)) @ blk['l2_w'] + blk['l2_b']
        xx = xx + h
    y = _silu(_layernorm(xx, p['out_ln_g'], p['out_ln_b'], 1e-6)) @ p['out_w'] + p['out_b']
    return y


# ----------------------------------- main --------------------------------------

if __name__ == "__main__":
    N, C, T, M, R = 8, 32, 64, 64, 2   # batch, channels, time_embed_dim, bottleneck, res blocks
    key = jax.random.PRNGKey(0)
    kx, kt, kp = jax.random.split(key, 3)

    x = jax.random.normal(kx, (N, C, 1, 1), jnp.float32)   # NCHW, image_size=1
    timesteps = jax.random.uniform(kt, (N,), jnp.float32, 0.0, 1000.0)

    # (a) the module's actual init state (zero_module linears are all-zero).
    params0 = init_params(kp, C, T, M, R, zero_init=True)
    out0 = jax.block_until_ready(
        simple_mlp_forward(x, timesteps, pack_params(params0, C, T, M, R), C, T, M, R))
    ref0 = _reference(x, timesteps, params0, C, R)
    assert out0.shape == (N, C), out0.shape
    assert jnp.allclose(out0, ref0, atol=1e-3, rtol=1e-3), "mismatch (zero-init) vs JAX reference"

    # (b) non-zero weights everywhere, so the zero_module matmul paths are
    #     exercised numerically rather than being trivially zero.
    params1 = init_params(kp, C, T, M, R, zero_init=False)
    out1 = jax.block_until_ready(
        simple_mlp_forward(x, timesteps, pack_params(params1, C, T, M, R), C, T, M, R))
    ref1 = _reference(x, timesteps, params1, C, R)
    err = float(jnp.max(jnp.abs(out1 - ref1)))
    assert jnp.allclose(out1, ref1, atol=1e-3, rtol=1e-3), f"max abs err {err}"

    # (c) non-tile-multiple batch exercises the padding path of the wrapper.
    Nb = 5
    xb = jax.random.normal(kx, (Nb, C, 1, 1), jnp.float32)
    tb = jax.random.uniform(kt, (Nb,), jnp.float32, 0.0, 1000.0)
    outb = jax.block_until_ready(
        simple_mlp_forward(xb, tb, pack_params(params1, C, T, M, R), C, T, M, R))
    refb = _reference(xb, tb, params1, C, R)
    assert outb.shape == (Nb, C)
    assert jnp.allclose(outb, refb, atol=1e-3, rtol=1e-3), "mismatch (padded batch)"

    # TODO(synk): Dropout (p=0, identity) and the use_context branch (disabled in
    # this configuration) are not implemented in the kernel.
    print("KERNEL_OK")
</pallas_src>

<mosaic_0001>
module attributes {stable_mosaic.version = 11 : i64} {
  func.func @kernel(%arg0: i32, %arg1: memref<8x32xf32, #tpu.memory_space<vmem>>, %arg2: memref<8x1xf32, #tpu.memory_space<vmem>>, %arg3: memref<504x64xf32, #tpu.memory_space<vmem>>, %arg4: memref<8x32xf32, #tpu.memory_space<vmem>>) attributes {dimension_semantics = [#tpu.dimension_semantics<parallel>], iteration_bounds = array<i64: 1>, scalar_prefetch = 0 : i64, scratch_operands = 0 : i64, tpu.core_type = #tpu.core_type<tc>, window_params = [{transform_indices = @transform_0, window_bounds = array<i64: 8, 32>}, {transform_indices = @transform_1, window_bounds = array<i64: 8, 1>}, {pipeline_mode = #tpu.pipeline_mode<synchronous>, transform_indices = @transform_2, window_bounds = array<i64: 504, 64>}, {transform_indices = @transform_3, window_bounds = array<i64: 8, 32>}]} {
    %c160 = arith.constant 160 : index
    %c0 = arith.constant 0 : index
    %0 = vector.load %arg3[%c160, %c0] : memref<504x64xf32, #tpu.memory_space<vmem>>, vector<8x64xf32>
    %1 = vector.extract_strided_slice %0 {offsets = [0, 0], sizes = [1, 32], strides = [1, 1]} : vector<8x64xf32> to vector<1x32xf32>
    %2 = vector.extract_strided_slice %0 {offsets = [1, 0], sizes = [1, 64], strides = [1, 1]} : vector<8x64xf32> to vector<1x64xf32>
    %3 = vector.extract_strided_slice %0 {offsets = [2, 0], sizes = [1, 64], strides = [1, 1]} : vector<8x64xf32> to vector<1x64xf32>
    %4 = vector.extract_strided_slice %0 {offsets = [3, 0], sizes = [1, 32], strides = [1, 1]} : vector<8x64xf32> to vector<1x32xf32>
    %5 = vector.extract_strided_slice %0 {offsets = [4, 0], sizes = [1, 32], strides = [1, 1]} : vector<8x64xf32> to vector<1x32xf32>
    %6 = vector.extract_strided_slice %0 {offsets = [5, 0], sizes = [1, 32], strides = [1, 1]} : vector<8x64xf32> to vector<1x32xf32>
    %c0_0 = arith.constant 0 : index
    %c0_1 = arith.constant 0 : index
    %7 = vector.load %arg1[%c0_0, %c0_1] : memref<8x32xf32, #tpu.memory_space<vmem>>, vector<8x32xf32>
    %8 = tpu.iota {dimensions = array<i32: 1>} : vector<1x32xi32>
    %c16_i32 = arith.constant 16 : i32
    %9 = vector.broadcast %c16_i32 : i32 to vector<1x32xi32>
    %10 = arith.cmpi slt, %8, %9 : vector<1x32xi32>
    %c16_i32_2 = arith.constant 16 : i32
    %11 = vector.broadcast %c16_i32_2 : i32 to vector<1x32xi32>
    %12 = arith.subi %8, %11 : vector<1x32xi32>
    %13 = arith.select %10, %8, %12 : vector<1x32xi1>, vector<1x32xi32>
    %14 = arith.sitofp %13 : vector<1x32xi32> to vector<1x32xf32>
    %cst = arith.constant -0.575646281 : f32
    %15 = vector.broadcast %cst : f32 to vector<1x32xf32>
    %16 = arith.mulf %14, %15 : vector<1x32xf32>
    %17 = math.exp %16 : vector<1x32xf32>
    %c0_3 = arith.constant 0 : index
    %c0_4 = arith.constant 0 : index
    %18 = vector.load %arg2[%c0_3, %c0_4] : memref<8x1xf32, #tpu.memory_space<vmem>>, vector<8x1xf32>
    %19 = vector.broadcast %18 : vector<8x1xf32> to vector<8x32xf32>
    %20 = vector.broadcast %17 : vector<1x32xf32> to vector<8x32xf32>
    %21 = arith.mulf %19, %20 : vector<8x32xf32>
    %22 = math.cos %21 : vector<8x32xf32>
    %23 = math.sin %21 : vector<8x32xf32>
    %24 = vector.shape_cast %10 : vector<1x32xi1> to vector<1x32xi1>
    %25 = vector.broadcast %24 : vector<1x32xi1> to vector<8x32xi1>
    %26 = arith.select %25, %22, %23 : vector<8x32xi1>, vector<8x32xf32>
    %c0_5 = arith.constant 0 : index
    %c0_6 = arith.constant 0 : index
    %27 = vector.load %arg3[%c0_5, %c0_6] : memref<504x64xf32, #tpu.memory_space<vmem>>, vector<32x32xf32>
    %cst_7 = arith.constant dense<0.000000e+00> : vector<8x32xf32>
    %28 = tpu.matmul %7, %27, %cst_7 {dimension_numbers = #tpu.dot_dimension_numbers<[1], [0], [0], [1], [0, 0, 1, 1], [], []>} : vector<8x32xf32>, vector<32x32xf32>, vector<8x32xf32> -> vector<8x32xf32>
    %29 = vector.broadcast %1 : vector<1x32xf32> to vector<8x32xf32>
    %30 = arith.addf %28, %29 : vector<8x32xf32>
    %c32 = arith.constant 32 : index
    %c0_8 = arith.constant 0 : index
    %31 = vector.load %arg3[%c32, %c0_8] : memref<504x64xf32, #tpu.memory_space<vmem>>, vector<32x64xf32>
    %cst_9 = arith.constant dense<0.000000e+00> : vector<8x64xf32>
    %32 = tpu.matmul %26, %31, %cst_9 {dimension_numbers = #tpu.dot_dimension_numbers<[1], [0], [0], [1], [0, 0, 1, 1], [], []>} : vector<8x32xf32>, vector<32x64xf32>, vector<8x64xf32> -> vector<8x64xf32>
    %33 = vector.broadcast %2 : vector<1x64xf32> to vector<8x64xf32>
    %34 = arith.addf %32, %33 : vector<8x64xf32>
    %35 = arith.negf %34 : vector<8x64xf32>
    %36 = math.exp %35 : vector<8x64xf32>
    %cst_10 = arith.constant 1.000000e+00 : f32
    %37 = vector.broadcast %cst_10 : f32 to vector<8x64xf32>
    %38 = arith.addf %37, %36 : vector<8x64xf32>
    %39 = arith.divf %37, %38 : vector<8x64xf32>
    %40 = arith.mulf %34, %39 : vector<8x64xf32>
    %c64 = arith.constant 64 : index
    %c0_11 = arith.constant 0 : index
    %41 = vector.load %arg3[%c64, %c0_11] : memref<504x64xf32, #tpu.memory_space<vmem>>, vector<64x64xf32>
    %cst_12 = arith.constant dense<0.000000e+00> : vector<8x64xf32>
    %42 = tpu.matmul %40, %41, %cst_12 {dimension_numbers = #tpu.dot_dimension_numbers<[1], [0], [0], [1], [0, 0, 1, 1], [], []>} : vector<8x64xf32>, vector<64x64xf32>, vector<8x64xf32> -> vector<8x64xf32>
    %43 = vector.broadcast %3 : vector<1x64xf32> to vector<8x64xf32>
    %44 = arith.addf %42, %43 : vector<8x64xf32>
    %45 = arith.negf %44 : vector<8x64xf32>
    %46 = math.exp %45 : vector<8x64xf32>
    %cst_13 = arith.constant 1.000000e+00 : f32
    %47 = vector.broadcast %cst_13 : f32 to vector<8x64xf32>
    %48 = arith.addf %47, %46 : vector<8x64xf32>
    %49 = arith.divf %47, %48 : vector<8x64xf32>
    %50 = arith.mulf %44, %49 : vector<8x64xf32>
    %c328 = arith.constant 328 : index
    %c0_14 = arith.constant 0 : index
    %51 = vector.load %arg3[%c328, %c0_14] : memref<504x64xf32, #tpu.memory_space<vmem>>, vector<8x64xf32>
    %52 = vector.extract_strided_slice %51 {offsets = [0, 0], sizes = [1, 32], strides = [1, 1]} : vector<8x64xf32> to vector<1x32xf32>
    %53 = vector.extract_strided_slice %51 {offsets = [1, 0], sizes = [1, 32], strides = [1, 1]} : vector<8x64xf32> to vector<1x32xf32>
    %54 = vector.extract_strided_slice %51 {offsets = [2, 0], sizes = [1, 64], strides = [1, 1]} : vector<8x64xf32> to vector<1x64xf32>
    %55 = vector.extract_strided_slice %51 {offsets = [3, 0], sizes = [1, 64], strides = [1, 1]} : vector<8x64xf32> to vector<1x64xf32>
    %56 = vector.extract_strided_slice %51 {offsets = [4, 0], sizes = [1, 64], strides = [1, 1]} : vector<8x64xf32> to vector<1x64xf32>
    %57 = vector.extract_strided_slice %51 {offsets = [5, 0], sizes = [1, 32], strides = [1, 1]} : vector<8x64xf32> to vector<1x32xf32>
    %cst_15 = arith.constant dense<0.000000e+00> : vector<8xf32>
    %58 = vector.multi_reduction <add>, %30, %cst_15 [1] : vector<8x32xf32> to vector<8xf32>
    %59 = vector.shape_cast %58 : vector<8xf32> to vector<8x1xf32>
    %cst_16 = arith.constant 3.200000e+01 : f32
    %60 = vector.broadcast %cst_16 : f32 to vector<8x1xf32>
    %61 = arith.divf %59, %60 : vector<8x1xf32>
    %62 = vector.broadcast %61 : vector<8x1xf32> to vector<8x32xf32>
    %63 = arith.subf %30, %62 : vector<8x32xf32>
    %64 = arith.mulf %63, %63 : vector<8x32xf32>
    %cst_17 = arith.constant dense<0.000000e+00> : vector<8xf32>
    %65 = vector.multi_reduction <add>, %64, %cst_17 [1] : vector<8x32xf32> to vector<8xf32>
    %66 = vector.shape_cast %65 : vector<8xf32> to vector<8x1xf32>
    %cst_18 = arith.constant 3.200000e+01 : f32
    %67 = vector.broadcast %cst_18 : f32 to vector<8x1xf32>
    %68 = arith.divf %66, %67 : vector<8x1xf32>
    %69 = vector.broadcast %61 : vector<8x1xf32> to vector<8x32xf32>
    %70 = arith.subf %30, %69 : vector<8x32xf32>
    %cst_19 = arith.constant 9.99999974E-6 : f32
    %71 = vector.broadcast %cst_19 : f32 to vector<8x1xf32>
    %72 = arith.addf %68, %71 : vector<8x1xf32>
    %73 = math.rsqrt %72 : vector<8x1xf32>
    %74 = vector.broadcast %73 : vector<8x1xf32> to vector<8x32xf32>
    %75 = arith.mulf %70, %74 : vector<8x32xf32>
    %76 = vector.broadcast %52 : vector<1x32xf32> to vector<8x32xf32>
    %77 = arith.mulf %75, %76 : vector<8x32xf32>
    %78 = vector.broadcast %53 : vector<1x32xf32> to vector<8x32xf32>
    %79 = arith.addf %77, %78 : vector<8x32xf32>
    %80 = arith.negf %79 : vector<8x32xf32>
    %81 = math.exp %80 : vector<8x32xf32>
    %cst_20 = arith.constant 1.000000e+00 : f32
    %82 = vector.broadcast %cst_20 : f32 to vector<8x32xf32>
    %83 = arith.addf %82, %81 : vector<8x32xf32>
    %84 = arith.divf %82, %83 : vector<8x32xf32>
    %85 = arith.mulf %79, %84 : vector<8x32xf32>
    %86 = tpu.concatenate %85, %50 in 1 : vector<8x32xf32>, vector<8x64xf32> -> vector<8x96xf32>
    %c168 = arith.constant 168 : index
    %c0_21 = arith.constant 0 : index
    %87 = vector.load %arg3[%c168, %c0_21] : memref<504x64xf32, #tpu.memory_space<vmem>>, vector<96x64xf32>
    %cst_22 = arith.constant dense<0.000000e+00> : vector<8x64xf32>
    %88 = tpu.matmul %86, %87, %cst_22 {dimension_numbers = #tpu.dot_dimension_numbers<[1], [0], [0], [1], [0, 0, 1, 1], [], []>} : vector<8x96xf32>, vector<96x64xf32>, vector<8x64xf32> -> vector<8x64xf32>
    %89 = vector.broadcast %54 : vector<1x64xf32> to vector<8x64xf32>
    %90 = arith.addf %88, %89 : vector<8x64xf32>
    %cst_23 = arith.constant dense<0.000000e+00> : vector<8xf32>
    %91 = vector.multi_reduction <add>, %90, %cst_23 [1] : vector<8x64xf32> to vector<8xf32>
    %92 = vector.shape_cast %91 : vector<8xf32> to vector<8x1xf32>
    %cst_24 = arith.constant 6.400000e+01 : f32
    %93 = vector.broadcast %cst_24 : f32 to vector<8x1xf32>
    %94 = arith.divf %92, %93 : vector<8x1xf32>
    %95 = vector.broadcast %94 : vector<8x1xf32> to vector<8x64xf32>
    %96 = arith.subf %90, %95 : vector<8x64xf32>
    %97 = arith.mulf %96, %96 : vector<8x64xf32>
    %cst_25 = arith.constant dense<0.000000e+00> : vector<8xf32>
    %98 = vector.multi_reduction <add>, %97, %cst_25 [1] : vector<8x64xf32> to vector<8xf32>
    %99 = vector.shape_cast %98 : vector<8xf32> to vector<8x1xf32>
    %cst_26 = arith.constant 6.400000e+01 : f32
    %100 = vector.broadcast %cst_26 : f32 to vector<8x1xf32>
    %101 = arith.divf %99, %100 : vector<8x1xf32>
    %102 = vector.broadcast %94 : vector<8x1xf32> to vector<8x64xf32>
    %103 = arith.subf %90, %102 : vector<8x64xf32>
    %cst_27 = arith.constant 9.99999974E-6 : f32
    %104 = vector.broadcast %cst_27 : f32 to vector<8x1xf32>
    %105 = arith.addf %101, %104 : vector<8x1xf32>
    %106 = math.rsqrt %105 : vector<8x1xf32>
    %107 = vector.broadcast %106 : vector<8x1xf32> to vector<8x64xf32>
    %108 = arith.mulf %103, %107 : vector<8x64xf32>
    %109 = vector.broadcast %55 : vector<1x64xf32> to vector<8x64xf32>
    %110 = arith.mulf %108, %109 : vector<8x64xf32>
    %111 = vector.broadcast %56 : vector<1x64xf32> to vector<8x64xf32>
    %112 = arith.addf %110, %111 : vector<8x64xf32>
    %113 = arith.negf %112 : vector<8x64xf32>
    %114 = math.exp %113 : vector<8x64xf32>
    %cst_28 = arith.constant 1.000000e+00 : f32
    %115 = vector.broadcast %cst_28 : f32 to vector<8x64xf32>
    %116 = arith.addf %115, %114 : vector<8x64xf32>
    %117 = arith.divf %115, %116 : vector<8x64xf32>
    %118 = arith.mulf %112, %117 : vector<8x64xf32>
    %c264 = arith.constant 264 : index
    %c0_29 = arith.constant 0 : index
    %119 = vector.load %arg3[%c264, %c0_29] : memref<504x64xf32, #tpu.memory_space<vmem>>, vector<64x32xf32>
    %cst_30 = arith.constant dense<0.000000e+00> : vector<8x32xf32>
    %120 = tpu.matmul %118, %119, %cst_30 {dimension_numbers = #tpu.dot_dimension_numbers<[1], [0], [0], [1], [0, 0, 1, 1], [], []>} : vector<8x64xf32>, vector<64x32xf32>, vector<8x32xf32> -> vector<8x32xf32>
    %121 = vector.broadcast %57 : vector<1x32xf32> to vector<8x32xf32>
    %122 = arith.addf %120, %121 : vector<8x32xf32>
    %123 = arith.addf %30, %122 : vector<8x32xf32>
    %c496 = arith.constant 496 : index
    %c0_31 = arith.constant 0 : index
    %124 = vector.load %arg3[%c496, %c0_31] : memref<504x64xf32, #tpu.memory_space<vmem>>, vector<8x64xf32>
    %125 = vector.extract_strided_slice %124 {offsets = [0, 0], sizes = [1, 32], strides = [1, 1]} : vector<8x64xf32> to vector<1x32xf32>
    %126 = vector.extract_strided_slice %124 {offsets = [1, 0], sizes = [1, 32], strides = [1, 1]} : vector<8x64xf32> to vector<1x32xf32>
    %127 = vector.extract_strided_slice %124 {offsets = [2, 0], sizes = [1, 64], strides = [1, 1]} : vector<8x64xf32> to vector<1x64xf32>
    %128 = vector.extract_strided_slice %124 {offsets = [3, 0], sizes = [1, 64], strides = [1, 1]} : vector<8x64xf32> to vector<1x64xf32>
    %129 = vector.extract_strided_slice %124 {offsets = [4, 0], sizes = [1, 64], strides = [1, 1]} : vector<8x64xf32> to vector<1x64xf32>
    %130 = vector.extract_strided_slice %124 {offsets = [5, 0], sizes = [1, 32], strides = [1, 1]} : vector<8x64xf32> to vector<1x32xf32>
    %cst_32 = arith.constant dense<0.000000e+00> : vector<8xf32>
    %131 = vector.multi_reduction <add>, %123, %cst_32 [1] : vector<8x32xf32> to vector<8xf32>
    %132 = vector.shape_cast %131 : vector<8xf32> to vector<8x1xf32>
    %cst_33 = arith.constant 3.200000e+01 : f32
    %133 = vector.broadcast %cst_33 : f32 to vector<8x1xf32>
    %134 = arith.divf %132, %133 : vector<8x1xf32>
    %135 = vector.broadcast %134 : vector<8x1xf32> to vector<8x32xf32>
    %136 = arith.subf %123, %135 : vector<8x32xf32>
    %137 = arith.mulf %136, %136 : vector<8x32xf32>
    %cst_34 = arith.constant dense<0.000000e+00> : vector<8xf32>
    %138 = vector.multi_reduction <add>, %137, %cst_34 [1] : vector<8x32xf32> to vector<8xf32>
    %139 = vector.shape_cast %138 : vector<8xf32> to vector<8x1xf32>
    %cst_35 = arith.constant 3.200000e+01 : f32
    %140 = vector.broadcast %cst_35 : f32 to vector<8x1xf32>
    %141 = arith.divf %139, %140 : vector<8x1xf32>
    %142 = vector.broadcast %134 : vector<8x1xf32> to vector<8x32xf32>
    %143 = arith.subf %123, %142 : vector<8x32xf32>
    %cst_36 = arith.constant 9.99999974E-6 : f32
    %144 = vector.broadcast %cst_36 : f32 to vector<8x1xf32>
    %145 = arith.addf %141, %144 : vector<8x1xf32>
    %146 = math.rsqrt %145 : vector<8x1xf32>
    %147 = vector.broadcast %146 : vector<8x1xf32> to vector<8x32xf32>
    %148 = arith.mulf %143, %147 : vector<8x32xf32>
    %149 = vector.broadcast %125 : vector<1x32xf32> to vector<8x32xf32>
    %150 = arith.mulf %148, %149 : vector<8x32xf32>
    %151 = vector.broadcast %126 : vector<1x32xf32> to vector<8x32xf32>
    %152 = arith.addf %150, %151 : vector<8x32xf32>
    %153 = arith.negf %152 : vector<8x32xf32>
    %154 = math.exp %153 : vector<8x32xf32>
    %cst_37 = arith.constant 1.000000e+00 : f32
    %155 = vector.broadcast %cst_37 : f32 to vector<8x32xf32>
    %156 = arith.addf %155, %154 : vector<8x32xf32>
    %157 = arith.divf %155, %156 : vector<8x32xf32>
    %158 = arith.mulf %152, %157 : vector<8x32xf32>
    %159 = tpu.concatenate %158, %50 in 1 : vector<8x32xf32>, vector<8x64xf32> -> vector<8x96xf32>
    %c336 = arith.constant 336 : index
    %c0_38 = arith.constant 0 : index
    %160 = vector.load %arg3[%c336, %c0_38] : memref<504x64xf32, #tpu.memory_space<vmem>>, vector<96x64xf32>
    %cst_39 = arith.constant dense<0.000000e+00> : vector<8x64xf32>
    %161 = tpu.matmul %159, %160, %cst_39 {dimension_numbers = #tpu.dot_dimension_numbers<[1], [0], [0], [1], [0, 0, 1, 1], [], []>} : vector<8x96xf32>, vector<96x64xf32>, vector<8x64xf32> -> vector<8x64xf32>
    %162 = vector.broadcast %127 : vector<1x64xf32> to vector<8x64xf32>
    %163 = arith.addf %161, %162 : vector<8x64xf32>
    %cst_40 = arith.constant dense<0.000000e+00> : vector<8xf32>
    %164 = vector.multi_reduction <add>, %163, %cst_40 [1] : vector<8x64xf32> to vector<8xf32>
    %165 = vector.shape_cast %164 : vector<8xf32> to vector<8x1xf32>
    %cst_41 = arith.constant 6.400000e+01 : f32
    %166 = vector.broadcast %cst_41 : f32 to vector<8x1xf32>
    %167 = arith.divf %165, %166 : vector<8x1xf32>
    %168 = vector.broadcast %167 : vector<8x1xf32> to vector<8x64xf32>
    %169 = arith.subf %163, %168 : vector<8x64xf32>
    %170 = arith.mulf %169, %169 : vector<8x64xf32>
    %cst_42 = arith.constant dense<0.000000e+00> : vector<8xf32>
    %171 = vector.multi_reduction <add>, %170, %cst_42 [1] : vector<8x64xf32> to vector<8xf32>
    %172 = vector.shape_cast %171 : vector<8xf32> to vector<8x1xf32>
    %cst_43 = arith.constant 6.400000e+01 : f32
    %173 = vector.broadcast %cst_43 : f32 to vector<8x1xf32>
    %174 = arith.divf %172, %173 : vector<8x1xf32>
    %175 = vector.broadcast %167 : vector<8x1xf32> to vector<8x64xf32>
    %176 = arith.subf %163, %175 : vector<8x64xf32>
    %cst_44 = arith.constant 9.99999974E-6 : f32
    %177 = vector.broadcast %cst_44 : f32 to vector<8x1xf32>
    %178 = arith.addf %174, %177 : vector<8x1xf32>
    %179 = math.rsqrt %178 : vector<8x1xf32>
    %180 = vector.broadcast %179 : vector<8x1xf32> to vector<8x64xf32>
    %181 = arith.mulf %176, %180 : vector<8x64xf32>
    %182 = vector.broadcast %128 : vector<1x64xf32> to vector<8x64xf32>
    %183 = arith.mulf %181, %182 : vector<8x64xf32>
    %184 = vector.broadcast %129 : vector<1x64xf32> to vector<8x64xf32>
    %185 = arith.addf %183, %184 : vector<8x64xf32>
    %186 = arith.negf %185 : vector<8x64xf32>
    %187 = math.exp %186 : vector<8x64xf32>
    %cst_45 = arith.constant 1.000000e+00 : f32
    %188 = vector.broadcast %cst_45 : f32 to vector<8x64xf32>
    %189 = arith.addf %188, %187 : vector<8x64xf32>
    %190 = arith.divf %188, %189 : vector<8x64xf32>
    %191 = arith.mulf %185, %190 : vector<8x64xf32>
    %c432 = arith.constant 432 : index
    %c0_46 = arith.constant 0 : index
    %192 = vector.load %arg3[%c432, %c0_46] : memref<504x64xf32, #tpu.memory_space<vmem>>, vector<64x32xf32>
    %cst_47 = arith.constant dense<0.000000e+00> : vector<8x32xf32>
    %193 = tpu.matmul %191, %192, %cst_47 {dimension_numbers = #tpu.dot_dimension_numbers<[1], [0], [0], [1], [0, 0, 1, 1], [], []>} : vector<8x64xf32>, vector<64x32xf32>, vector<8x32xf32> -> vector<8x32xf32>
    %194 = vector.broadcast %130 : vector<1x32xf32> to vector<8x32xf32>
    %195 = arith.addf %193, %194 : vector<8x32xf32>
    %196 = arith.addf %123, %195 : vector<8x32xf32>
    %cst_48 = arith.constant dense<0.000000e+00> : vector<8xf32>
    %197 = vector.multi_reduction <add>, %196, %cst_48 [1] : vector<8x32xf32> to vector<8xf32>
    %198 = vector.shape_cast %197 : vector<8xf32> to vector<8x1xf32>
    %cst_49 = arith.constant 3.200000e+01 : f32
    %199 = vector.broadcast %cst_49 : f32 to vector<8x1xf32>
    %200 = arith.divf %198, %199 : vector<8x1xf32>
    %201 = vector.broadcast %200 : vector<8x1xf32> to vector<8x32xf32>
    %202 = arith.subf %196, %201 : vector<8x32xf32>
    %203 = arith.mulf %202, %202 : vector<8x32xf32>
    %cst_50 = arith.constant dense<0.000000e+00> : vector<8xf32>
    %204 = vector.multi_reduction <add>, %203, %cst_50 [1] : vector<8x32xf32> to vector<8xf32>
    %205 = vector.shape_cast %204 : vector<8xf32> to vector<8x1xf32>
    %cst_51 = arith.constant 3.200000e+01 : f32
    %206 = vector.broadcast %cst_51 : f32 to vector<8x1xf32>
    %207 = arith.divf %205, %206 : vector<8x1xf32>
    %208 = vector.broadcast %200 : vector<8x1xf32> to vector<8x32xf32>
    %209 = arith.subf %196, %208 : vector<8x32xf32>
    %cst_52 = arith.constant 9.99999997E-7 : f32
    %210 = vector.broadcast %cst_52 : f32 to vector<8x1xf32>
    %211 = arith.addf %207, %210 : vector<8x1xf32>
    %212 = math.rsqrt %211 : vector<8x1xf32>
    %213 = vector.broadcast %212 : vector<8x1xf32> to vector<8x32xf32>
    %214 = arith.mulf %209, %213 : vector<8x32xf32>
    %215 = vector.broadcast %4 : vector<1x32xf32> to vector<8x32xf32>
    %216 = arith.mulf %214, %215 : vector<8x32xf32>
    %217 = vector.broadcast %5 : vector<1x32xf32> to vector<8x32xf32>
    %218 = arith.addf %216, %217 : vector<8x32xf32>
    %219 = arith.negf %218 : vector<8x32xf32>
    %220 = math.exp %219 : vector<8x32xf32>
    %cst_53 = arith.constant 1.000000e+00 : f32
    %221 = vector.broadcast %cst_53 : f32 to vector<8x32xf32>
    %222 = arith.addf %221, %220 : vector<8x32xf32>
    %223 = arith.divf %221, %222 : vector<8x32xf32>
    %224 = arith.mulf %218, %223 : vector<8x32xf32>
    %c128 = arith.constant 128 : index
    %c0_54 = arith.constant 0 : index
    %225 = vector.load %arg3[%c128, %c0_54] : memref<504x64xf32, #tpu.memory_space<vmem>>, vector<32x32xf32>
    %cst_55 = arith.constant dense<0.000000e+00> : vector<8x32xf32>
    %226 = tpu.matmul %224, %225, %cst_55 {dimension_numbers = #tpu.dot_dimension_numbers<[1], [0], [0], [1], [0, 0, 1, 1], [], []>} : vector<8x32xf32>, vector<32x32xf32>, vector<8x32xf32> -> vector<8x32xf32>
    %227 = vector.broadcast %6 : vector<1x32xf32> to vector<8x32xf32>
    %228 = arith.addf %226, %227 : vector<8x32xf32>
    %c0_56 = arith.constant 0 : index
    %c0_57 = arith.constant 0 : index
    %229 = vector.load %arg4[%c0_56, %c0_57] : memref<8x32xf32, #tpu.memory_space<vmem>>, vector<8x32xf32>
    tpu.vector_store %arg4[%c0_56, %c0_57], %228 {strides = array<i32>} : memref<8x32xf32, #tpu.memory_space<vmem>>, vector<8x32xf32>,
    return
  }
  func.func @transform_0(%arg0: i32) -> (i32, i32) {
    %c0_i32 = arith.constant 0 : i32
    %c0_i32_0 = arith.constant 0 : i32
    return %arg0, %c0_i32 : i32, i32
  }
  func.func @transform_1(%arg0: i32) -> (i32, i32) {
    %c0_i32 = arith.constant 0 : i32
    %c0_i32_0 = arith.constant 0 : i32
    return %arg0, %c0_i32 : i32, i32
  }
  func.func @transform_2(%arg0: i32) -> (i32, i32) {
    %c0_i32 = arith.constant 0 : i32
    %c0_i32_0 = arith.constant 0 : i32
    %c0_i32_1 = arith.constant 0 : i32
    return %c0_i32, %c0_i32_0 : i32, i32
  }
  func.func @transform_3(%arg0: i32) -> (i32, i32) {
    %c0_i32 = arith.constant 0 : i32
    %c0_i32_0 = arith.constant 0 : i32
    return %arg0, %c0_i32 : i32, i32
  }
}

</mosaic_0001>

<llo_original>
// kernel: tpu_custom_call.1
$region0: #{tpu_custom_call.1}
  #allocation0 [shape = 'u32[]', space=smem, size = 0x4, offset = 0x4, fixed_abs, tag = 'smem constant byte address 0x4 - core index']
  #allocation1 [shape = 'u32[144,128]{1,0:T(1,128)}', space=vmem, size = 0x12000, scoped, tag = 'internal scratch']
  %s0 = inlined_call_operand.vmem [shape: f32[8,32], index: 0, kind: input, shape index: {}]
  %s1 = inlined_call_operand.vmem [shape: f32[8,1], index: 1, kind: input, shape index: {}]
  %s2 = inlined_call_operand.vmem [shape: f32[504,64], index: 2, kind: input, shape index: {}]
  %s3 = inlined_call_operand.hbm [shape: f32[8,32], index: 3, kind: output, shape index: {}]
  %s4 = sld [smem:[#allocation0]]
  $region22: #{tpu_custom_call.1} parent=0
    _
  %s6 = ssub.s32 1, %s4
  %s7 = scalar_select 0, %s6, %s4
  $region1: #{tpu_custom_call.1} parent=0
    #allocation2 [shape = 'u8[4096]{0}', space=vmem, size = 0x1000, scoped, tag = 'output window, operand 0, single buffered']
    #allocation3 [shape = 's32[1]{0}', space=sflag, size = 0x4, scoped, tag = 'scoped memory for tpu_custom_call.1']
    %8 = vsyncpa [#allocation3], 0
    // Predicated region
    $region2: #{tpu_custom_call.1} parent=1 // pred_check
      _
    $region3: #{tpu_custom_call.1} parent=1 // pred_check_branch
      %10 = sbr.rel (0) target = $region5
    $region4: #{tpu_custom_call.1} parent=1 // pred_region
      _
    $region5: #{tpu_custom_call.1} parent=1 // pred_fallthru
      _
    // Predicated region
    $region6: #{tpu_custom_call.1} parent=1 // pred_check
      _
    $region7: #{tpu_custom_call.1} parent=1 // pred_check_branch
      %12 = sbr.rel (0) target = $region9
    $region8: #{tpu_custom_call.1} parent=1 // pred_region
      _
    $region9: #{tpu_custom_call.1} parent=1 // pred_fallthru
      _
    // Predicated region
    $region10: #{tpu_custom_call.1} parent=1 // pred_check
      _
    $region11: #{tpu_custom_call.1} parent=1 // pred_check_branch
      %14 = sbr.rel (0) target = $region13
    $region12: #{tpu_custom_call.1} parent=1 // pred_region
      _
    $region13: #{tpu_custom_call.1} parent=1 // pred_fallthru
      _
    %v15 = vld [vmem:[%s2 + $0xa0] sm:$0xff]
    %v16 = vld [vmem:[%s0] sm:$0xff]
    %v17 = vlaneseq
    %v18 = vand.u32 %v17, 127
    %vm19 = vcmp.lt.s32.totalorder %v18, 16
    %v20 = vsub.s32 %v18, 16
    %v21 = vsel %vm19, %v18, %v20
    %v22 = vcvt.s32.f32 %v21
    %v23 = vmul.f32 %v22, -0.5756463
    %v24 = vmul.f32 %v23, 1.442695
    %v25 = vpow.pop %v24
    %v26 = vld [vmem:[%s1] sm:$0xff]
    %28 = vset.pattern.permute.xlu0 0
    %29 = vperm.xlu0 %28, %v26
    %v30 = vpop.permute.xlu0 %29
    %v32 = vmul.f32 %v30, %v25
    %v33 = vand.u32 2147483647, %v32
    %vm34 = vcmp.le.f32.partialorder %v33, 0.7853982
    %vm35 = vcmp.lt.s32.totalorder %v32, 0
    %v36 = vand.u32 %v32, 2139095040
    %v37 = vshrl.u32 %v36, 23
    %v38 = vsub.s32 %v37, 127
    %v39 = vand.u32 2147483647, %v32
    %v40 = vand.u32 %v39, 8388607
    %v41 = vor.u32 %v40, 8388608
    %v42 = vsub.s32 0, %v41
    %v43 = vadd.s32 %v38, 1
    %vm44 = vcmp.gt.s32.totalorder %v43, 0
    %v45 = vsel %vm44, %v43, 0
    %v46 = vshrl.u32 %v45, 5
    %v47 = vand.u32 %v45, 31
    %v48 = vsub.s32 32, %v47
    %v49 = vshrl.u32 683565275, %v48
    %v50 = vshll.u32 683565275, %v47
    %v51 = vshrl.u32 2475754826, %v48
    %v52 = vor.u32 %v50, %v51
    %v53 = vshll.u32 2475754826, %v47
    %v54 = vshrl.u32 2131351028, %v48
    %v55 = vor.u32 %v53, %v54
    %v56 = vshll.u32 2131351028, %v47
    %v57 = vshrl.u32 2102212464, %v48
    %v58 = vor.u32 %v56, %v57
    %v59 = vshll.u32 2102212464, %v47
    %v60 = vshrl.u32 920167782, %v48
    %v61 = vor.u32 %v59, %v60
    %v62 = vshll.u32 920167782, %v47
    %v63 = vshrl.u32 1326507024, %v48
    %v64 = vor.u32 %v62, %v63
    %vm65 = vcmp.lt.s32.totalorder %v46, 1
    %vm66 = vcmp.lt.s32.totalorder %v46, 2
    %vm67 = vcmp.lt.s32.totalorder %v46, 3
    %vm68 = vcmp.lt.s32.totalorder %v46, 4
    %v69 = vsel %vm65, %v49, %v52
    %v70 = vsel %vm68, %v58, 2102212464
    %v71 = vsel %vm67, %v55, %v70
    %v72 = vsel %vm66, %v69, %v71
    %v73 = vsel %vm65, %v52, %v55
    %v74 = vsel %vm68, %v61, 920167782
    %v75 = vsel %vm67, %v58, %v74
    %v76 = vsel %vm66, %v73, %v75
    %v77 = vsel %vm65, %v55, %v58
    %v78 = vsel %vm68, %v64, 1326507024
    %v79 = vsel %vm67, %v61, %v78
    %v80 = vsel %vm66, %v77, %v79
    %v81 = vshll.u32 %v41, 8
    %v82 = vmul.u32.u64.compose %v81, %v80
    %v83 = vextract.low.u32 %v82
    %v84 = vextract.high.u32 %v82
    %v85 = vmul.u32.u64.compose %v81, %v76
    %v86 = vextract.low.u32 %v85
    %v87 = vextract.high.u32 %v85
    %v88 = vmul.u32 %v81, %v72
    %v89 = vadd.s32 %v84, %v86
    %vm90 = vc.u32 %v84, %v86
    %v91 = vadd.s32 %v87, 1
    %v92 = vsel %vm90, %v91, %v87
    %v93 = vadd.s32 %v88, %v92
    %v94 = vadd.s32 %v93, 536870912
    %v95 = vshrl.u32 %v94, 30
    %v96 = vshll.u32 %v95, 30
    %v97 = vsub.s32 %v93, %v96
    %vm98 = vcmp.lt.s32.totalorder %v97, 0
    %v99 = vsub.s32 0, %v97
    %v100 = vsel %vm98, %v99, %v97
    %v101 = vclz %v100
    %v102 = vsub.s32 %v101, 2
    %vm103 = vcmp.gt.s32.totalorder 0, %v102
    %v104 = vsel %vm103, 0, %v102
    %v105 = vsub.s32 32, %v104
    %v106 = vshll.u32 %v97, %v104
    %v107 = vshrl.u32 %v89, %v105
    %v108 = vor.u32 %v106, %v107
    %v109 = vsub.s32 4294967266, %v104
    %v110 = vadd.s32 %v109, 127
    %v111 = vshll.u32 %v110, 23
    %v112 = vor.u32 4788187, %v111
    %v113 = vand.u32 2147483647, %v112
    %v115 = vcvt.s32.f32 %v108
    %v116 = vmul.f32 %v115, %v113
    %v117 = vxor.u32 %v116, 2147483648
    %v118 = vsel %vm35, %v117, %v116
    %v119 = vsub.s32 4, %v95
    %v120 = vsel %vm35, %v119, %v95
    %v121 = vsel %vm34, %v32, %v118
    %v122 = vsel %vm34, 0, %v120
    %v123 = vcosq.f32.pop %v121
    %v124 = vsinq.f32.pop %v121
    %vm125 = vweird.f32 %v32
    %v126 = vand.u32 %v122, 3
    %vm127 = vcmp.lt.s32.totalorder %v126, 2
    %vm128 = vcmp.eq.s32.totalorder %v126, 0
    %v129 = vxor.u32 %v124, 2147483648
    %v130 = vsel %vm128, %v123, %v129
    %vm131 = vcmp.eq.s32.totalorder %v126, 2
    %v132 = vxor.u32 %v123, 2147483648
    %v133 = vsel %vm131, %v132, %v124
    %v134 = vsel %vm127, %v130, %v133
    %v135 = vsel %vm125, nan, %v134
    %v136 = vand.u32 2147483647, %v32
    %vm137 = vcmp.le.f32.partialorder %v136, 0.7853982
    %vm138 = vcmp.lt.s32.totalorder %v32, 0
    %v139 = vand.u32 %v32, 2139095040
    %v140 = vshrl.u32 %v139, 23
    %v141 = vsub.s32 %v140, 127
    %v142 = vand.u32 2147483647, %v32
    %v143 = vand.u32 %v142, 8388607
    %v144 = vor.u32 %v143, 8388608
    %v145 = vsub.s32 0, %v144
    %v146 = vadd.s32 %v141, 1
    %vm147 = vcmp.gt.s32.totalorder %v146, 0
    %v148 = vsel %vm147, %v146, 0
    %v149 = vshrl.u32 %v148, 5
    %v150 = vand.u32 %v148, 31
    %v151 = vsub.s32 32, %v150
    %v152 = vshrl.u32 683565275, %v151
    %v153 = vshll.u32 683565275, %v150
    %v154 = vshrl.u32 2475754826, %v151
    %v155 = vor.u32 %v153, %v154
    %v156 = vshll.u32 2475754826, %v150
    %v157 = vshrl.u32 2131351028, %v151
    %v158 = vor.u32 %v156, %v157
    %v159 = vshll.u32 2131351028, %v150
    %v160 = vshrl.u32 2102212464, %v151
    %v161 = vor.u32 %v159, %v160
    %v162 = vshll.u32 2102212464, %v150
    %v163 = vshrl.u32 920167782, %v151
    %v164 = vor.u32 %v162, %v163
    %v165 = vshll.u32 920167782, %v150
    %v166 = vshrl.u32 1326507024, %v151
    %v167 = vor.u32 %v165, %v166
    %vm168 = vcmp.lt.s32.totalorder %v149, 1
    %vm169 = vcmp.lt.s32.totalorder %v149, 2
    %vm170 = vcmp.lt.s32.totalorder %v149, 3
    %vm171 = vcmp.lt.s32.totalorder %v149, 4
    %v172 = vsel %vm168, %v152, %v155
    %v173 = vsel %vm171, %v161, 2102212464
    %v174 = vsel %vm170, %v158, %v173
    %v175 = vsel %vm169, %v172, %v174
    %v176 = vsel %vm168, %v155, %v158
    %v177 = vsel %vm171, %v164, 920167782
    %v178 = vsel %vm170, %v161, %v177
    %v179 = vsel %vm169, %v176, %v178
    %v180 = vsel %vm168, %v158, %v161
    %v181 = vsel %vm171, %v167, 1326507024
    %v182 = vsel %vm170, %v164, %v181
    %v183 = vsel %vm169, %v180, %v182
    %v184 = vshll.u32 %v144, 8
    %v185 = vmul.u32.u64.compose %v184, %v183
    %v186 = vextract.low.u32 %v185
    %v187 = vextract.high.u32 %v185
    %v188 = vmul.u32.u64.compose %v184, %v179
    %v189 = vextract.low.u32 %v188
    %v190 = vextract.high.u32 %v188
    %v191 = vmul.u32 %v184, %v175
    %v192 = vadd.s32 %v187, %v189
    %vm193 = vc.u32 %v187, %v189
    %v194 = vadd.s32 %v190, 1
    %v195 = vsel %vm193, %v194, %v190
    %v196 = vadd.s32 %v191, %v195
    %v197 = vadd.s32 %v196, 536870912
    %v198 = vshrl.u32 %v197, 30
    %v199 = vshll.u32 %v198, 30
    %v200 = vsub.s32 %v196, %v199
    %vm201 = vcmp.lt.s32.totalorder %v200, 0
    %v202 = vsub.s32 0, %v200
    %v203 = vsel %vm201, %v202, %v200
    %v204 = vclz %v203
    %v205 = vsub.s32 %v204, 2
    %vm206 = vcmp.gt.s32.totalorder 0, %v205
    %v207 = vsel %vm206, 0, %v205
    %v208 = vsub.s32 32, %v207
    %v209 = vshll.u32 %v200, %v207
    %v210 = vshrl.u32 %v192, %v208
    %v211 = vor.u32 %v209, %v210
    %v212 = vsub.s32 4294967266, %v207
    %v213 = vadd.s32 %v212, 127
    %v214 = vshll.u32 %v213, 23
    %v215 = vor.u32 4788187, %v214
    %v216 = vand.u32 2147483647, %v215
    %v218 = vcvt.s32.f32 %v211
    %v219 = vmul.f32 %v218, %v216
    %v220 = vxor.u32 %v219, 2147483648
    %v221 = vsel %vm138, %v220, %v219
    %v222 = vsub.s32 4, %v198
    %v223 = vsel %vm138, %v222, %v198
    %v224 = vsel %vm137, %v32, %v221
    %v225 = vsel %vm137, 0, %v223
    %v226 = vcosq.f32.pop %v224
    %v227 = vsinq.f32.pop %v224
    %vm228 = vweird.f32 %v32
    %v229 = vadd.s32 %v225, 3
    %v230 = vand.u32 %v229, 3
    %vm231 = vcmp.lt.s32.totalorder %v230, 2
    %vm232 = vcmp.eq.s32.totalorder %v230, 0
    %v233 = vxor.u32 %v227, 2147483648
    %v234 = vsel %vm232, %v226, %v233
    %vm235 = vcmp.eq.s32.totalorder %v230, 2
    %v236 = vxor.u32 %v226, 2147483648
    %v237 = vsel %vm235, %v236, %v227
    %v238 = vsel %vm231, %v234, %v237
    %v239 = vsel %vm228, nan, %v238
    %v240 = vsel %vm19, 1, 0
    %vm241 = vcmp.eq.s32.totalorder %v240, 1
    %v242 = vsel %vm241, %v135, %v239
    %v243 = vld [vmem:[%s2] sm:$0xff]
    %v244 = vld [vmem:[%s2 + $0x8] sm:$0xff]
    %v245 = vld [vmem:[%s2 + $0x10] sm:$0xff]
    %v246 = vld [vmem:[%s2 + $0x18] sm:$0xff]
    %v247 = vlaneseq
    %v248 = vshrl.u32 %v247, 7
    %v249 = vsub.s32 0, %v248
    %v250 = vrot.slane %v15, %v249
    %vm251 = vcmask 261120
    %v253 = vsel %vm251, %v16, 0
    %255 = vmatprep.subr.mxu0 0.0
    %256 = vmatpush1.msra.mxu0 %v243
    %257 = vmatprep.subr.mxu0 0.0
    %258 = vmatpush1.msra.mxu0 %v244
    %259 = vmatprep.subr.mxu0 0.0
    %260 = vmatpush1.msra.mxu0 %v245
    %261 = vmatprep.subr.mxu0 0.0
    %262 = vmatpush1.msra.mxu0 %v246
    %263 = vmatprep.subr.mxu0 0.0
    %264 = vmatpush1.msra.mxu0 0.0
    %265 = vmatprep.subr.mxu0 0.0
    %266 = vmatpush1.msra.mxu0 0.0
    %267 = vmatprep.subr.mxu0 0.0
    %268 = vmatpush1.msra.mxu0 0.0
    %269 = vmatprep.subr.mxu0 0.0
    %270 = vmatpush1.msra.mxu0 0.0
    %271 = vmatprep.subr.mxu0 0.0
    %272 = vmatpush1.msra.mxu0 0.0
    %273 = vmatprep.subr.mxu0 0.0
    %274 = vmatpush1.msra.mxu0 0.0
    %275 = vmatprep.subr.mxu0 0.0
    %276 = vmatpush1.msra.mxu0 0.0
    %277 = vmatprep.subr.mxu0 0.0
    %278 = vmatpush1.msra.mxu0 0.0
    %279 = vmatprep.subr.mxu0 0.0
    %280 = vmatpush1.msra.mxu0 0.0
    %281 = vmatprep.subr.mxu0 0.0
    %282 = vmatpush1.msra.mxu0 0.0
    %283 = vmatprep.subr.mxu0 0.0
    %284 = vmatpush1.msra.mxu0 0.0
    %285 = vmatprep.subr.mxu0 0.0
    %286 = vmatpush1.msra.mxu0 0.0
    %287 = vmatprep.subr.mxu0 0.0
    %288 = vmatpush1.msra.mxu0 0.0
    %289 = vmatprep.subr.mxu0 0.0
    %290 = vmatpush1.msra.mxu0 0.0
    %291 = vmatprep.subr.mxu0 0.0
    %292 = vmatpush1.msra.mxu0 0.0
    %293 = vmatprep.subr.mxu0 0.0
    %294 = vmatpush1.msra.mxu0 0.0
    %295 = vmatprep.subr.mxu0 0.0
    %296 = vmatpush1.msra.mxu0 0.0
    %297 = vmatprep.subr.mxu0 0.0
    %298 = vmatpush1.msra.mxu0 0.0
    %299 = vmatprep.subr.mxu0 0.0
    %300 = vmatpush1.msra.mxu0 0.0
    %301 = vmatprep.subr.mxu0 0.0
    %302 = vmatpush1.msra.mxu0 0.0
    %303 = vmatprep.subr.mxu0 0.0
    %304 = vmatpush1.msra.mxu0 0.0
    %305 = vmatprep.subr.mxu0 0.0
    %306 = vmatpush1.msra.mxu0 0.0
    %307 = vmatprep.subr.mxu0 0.0
    %308 = vmatpush1.msra.mxu0 0.0
    %309 = vmatprep.subr.mxu0 0.0
    %310 = vmatpush1.msra.mxu0 0.0
    %311 = vmatprep.subr.mxu0 0.0
    %312 = vmatpush1.msra.mxu0 0.0
    %313 = vmatprep.subr.mxu0 0.0
    %314 = vmatpush1.msra.mxu0 0.0
    %315 = vmatprep.subr.mxu0 0.0
    %316 = vmatpush1.msra.mxu0 0.0
    %317 = vmatprep.subr.mxu0 0.0
    %318 = vmatpush1.msra.mxu0 0.0
    %319 = vmatprep.mubr.f32.mxu0 0.0
    %320 = vmatmul.mubr.f32.gmra.mrb[0].mxu0 %v253
    %v321 = vpop.f32.mrb[0].mxu0
    %v322 = vadd.f32 %v250, %v321
    %v323 = vpop.f32.mrb[0].mxu0
    %324 = vdwg.mxu0
    %v325 = vld [vmem:[%s2 + $0x20] sm:$0xff]
    %v326 = vld [vmem:[%s2 + $0x28] sm:$0xff]
    %v327 = vld [vmem:[%s2 + $0x30] sm:$0xff]
    %v328 = vld [vmem:[%s2 + $0x38] sm:$0xff]
    %v329 = vlaneseq
    %v330 = vshrl.u32 %v329, 7
    %v331 = vsub.s32 1, %v330
    %v332 = vrot.slane %v15, %v331
    %v334 = vsel %vm251, %v242, 0
    %336 = vmatprep.subr.mxu0 0.0
    %337 = vmatpush1.msra.mxu0 %v325
    %338 = vmatprep.subr.mxu0 0.0
    %339 = vmatpush1.msra.mxu0 %v326
    %340 = vmatprep.subr.mxu0 0.0
    %341 = vmatpush1.msra.mxu0 %v327
    %342 = vmatprep.subr.mxu0 0.0
    %343 = vmatpush1.msra.mxu0 %v328
    %344 = vmatprep.subr.mxu0 0.0
    %345 = vmatpush1.msra.mxu0 0.0
    %346 = vmatprep.subr.mxu0 0.0
    %347 = vmatpush1.msra.mxu0 0.0
    %348 = vmatprep.subr.mxu0 0.0
    %349 = vmatpush1.msra.mxu0 0.0
    %350 = vmatprep.subr.mxu0 0.0
    %351 = vmatpush1.msra.mxu0 0.0
    %352 = vmatprep.subr.mxu0 0.0
    %353 = vmatpush1.msra.mxu0 0.0
    %354 = vmatprep.subr.mxu0 0.0
    %355 = vmatpush1.msra.mxu0 0.0
    %356 = vmatprep.subr.mxu0 0.0
    %357 = vmatpush1.msra.mxu0 0.0
    %358 = vmatprep.subr.mxu0 0.0
    %359 = vmatpush1.msra.mxu0 0.0
    %360 = vmatprep.subr.mxu0 0.0
    %361 = vmatpush1.msra.mxu0 0.0
    %362 = vmatprep.subr.mxu0 0.0
    %363 = vmatpush1.msra.mxu0 0.0
    %364 = vmatprep.subr.mxu0 0.0
    %365 = vmatpush1.msra.mxu0 0.0
    %366 = vmatprep.subr.mxu0 0.0
    %367 = vmatpush1.msra.mxu0 0.0
    %368 = vmatprep.subr.mxu0 0.0
    %369 = vmatpush1.msra.mxu0 0.0
    %370 = vmatprep.subr.mxu0 0.0
    %371 = vmatpush1.msra.mxu0 0.0
    %372 = vmatprep.subr.mxu0 0.0
    %373 = vmatpush1.msra.mxu0 0.0
    %374 = vmatprep.subr.mxu0 0.0
    %375 = vmatpush1.msra.mxu0 0.0
    %376 = vmatprep.subr.mxu0 0.0
    %377 = vmatpush1.msra.mxu0 0.0
    %378 = vmatprep.subr.mxu0 0.0
    %379 = vmatpush1.msra.mxu0 0.0
    %380 = vmatprep.subr.mxu0 0.0
    %381 = vmatpush1.msra.mxu0 0.0
    %382 = vmatprep.subr.mxu0 0.0
    %383 = vmatpush1.msra.mxu0 0.0
    %384 = vmatprep.subr.mxu0 0.0
    %385 = vmatpush1.msra.mxu0 0.0
    %386 = vmatprep.subr.mxu0 0.0
    %387 = vmatpush1.msra.mxu0 0.0
    %388 = vmatprep.subr.mxu0 0.0
    %389 = vmatpush1.msra.mxu0 0.0
    %390 = vmatprep.subr.mxu0 0.0
    %391 = vmatpush1.msra.mxu0 0.0
    %392 = vmatprep.subr.mxu0 0.0
    %393 = vmatpush1.msra.mxu0 0.0
    %394 = vmatprep.subr.mxu0 0.0
    %395 = vmatpush1.msra.mxu0 0.0
    %396 = vmatprep.subr.mxu0 0.0
    %397 = vmatpush1.msra.mxu0 0.0
    %398 = vmatprep.subr.mxu0 0.0
    %399 = vmatpush1.msra.mxu0 0.0
    %400 = vmatprep.mubr.f32.mxu0 0.0
    %401 = vmatmul.mubr.f32.gmra.mrb[0].mxu0 %v334
    %v402 = vpop.f32.mrb[0].mxu0
    %v403 = vadd.f32 %v332, %v402
    %v404 = vpop.f32.mrb[0].mxu0
    %405 = vdwg.mxu0
    %v406 = vxor.u32 %v403, 2147483648
    %v407 = vmul.f32 %v406, 1.442695
    %v408 = vpow.pop %v407
    %v409 = vadd.f32 %v408, 1.0
    %v410 = vrcp.pop %v409
    %v411 = vmul.f32 1.0, %v410
    %v412 = vmul.f32 %v403, %v411
    %v413 = vld [vmem:[%s2 + $0x40] sm:$0xff]
    %v414 = vld [vmem:[%s2 + $0x48] sm:$0xff]
    %v415 = vld [vmem:[%s2 + $0x50] sm:$0xff]
    %v416 = vld [vmem:[%s2 + $0x58] sm:$0xff]
    %v417 = vld [vmem:[%s2 + $0x60] sm:$0xff]
    %v418 = vld [vmem:[%s2 + $0x68] sm:$0xff]
    %v419 = vld [vmem:[%s2 + $0x70] sm:$0xff]
    %v420 = vld [vmem:[%s2 + $0x78] sm:$0xff]
    %v421 = vlaneseq
    %v422 = vshrl.u32 %v421, 7
    %v423 = vsub.s32 2, %v422
    %v424 = vrot.slane %v15, %v423
    %vm425 = vcmask 523264
    %v427 = vsel %vm425, %v412, 0
    %429 = vmatprep.subr.mxu0 0.0
    %430 = vmatpush1.msra.mxu0 %v413
    %431 = vmatprep.subr.mxu0 0.0
    %432 = vmatpush1.msra.mxu0 %v414
    %433 = vmatprep.subr.mxu0 0.0
    %434 = vmatpush1.msra.mxu0 %v415
    %435 = vmatprep.subr.mxu0 0.0
    %436 = vmatpush1.msra.mxu0 %v416
    %437 = vmatprep.subr.mxu0 0.0
    %438 = vmatpush1.msra.mxu0 %v417
    %439 = vmatprep.subr.mxu0 0.0
    %440 = vmatpush1.msra.mxu0 %v418
    %441 = vmatprep.subr.mxu0 0.0
    %442 = vmatpush1.msra.mxu0 %v419
    %443 = vmatprep.subr.mxu0 0.0
    %444 = vmatpush1.msra.mxu0 %v420
    %445 = vmatprep.subr.mxu0 0.0
    %446 = vmatpush1.msra.mxu0 0.0
    %447 = vmatprep.subr.mxu0 0.0
    %448 = vmatpush1.msra.mxu0 0.0
    %449 = vmatprep.subr.mxu0 0.0
    %450 = vmatpush1.msra.mxu0 0.0
    %451 = vmatprep.subr.mxu0 0.0
    %452 = vmatpush1.msra.mxu0 0.0
    %453 = vmatprep.subr.mxu0 0.0
    %454 = vmatpush1.msra.mxu0 0.0
    %455 = vmatprep.subr.mxu0 0.0
    %456 = vmatpush1.msra.mxu0 0.0
    %457 = vmatprep.subr.mxu0 0.0
    %458 = vmatpush1.msra.mxu0 0.0
    %459 = vmatprep.subr.mxu0 0.0
    %460 = vmatpush1.msra.mxu0 0.0
    %461 = vmatprep.subr.mxu0 0.0
    %462 = vmatpush1.msra.mxu0 0.0
    %463 = vmatprep.subr.mxu0 0.0
    %464 = vmatpush1.msra.mxu0 0.0
    %465 = vmatprep.subr.mxu0 0.0
    %466 = vmatpush1.msra.mxu0 0.0
    %467 = vmatprep.subr.mxu0 0.0
    %468 = vmatpush1.msra.mxu0 0.0
    %469 = vmatprep.subr.mxu0 0.0
    %470 = vmatpush1.msra.mxu0 0.0
    %471 = vmatprep.subr.mxu0 0.0
    %472 = vmatpush1.msra.mxu0 0.0
    %473 = vmatprep.subr.mxu0 0.0
    %474 = vmatpush1.msra.mxu0 0.0
    %475 = vmatprep.subr.mxu0 0.0
    %476 = vmatpush1.msra.mxu0 0.0
    %477 = vmatprep.subr.mxu0 0.0
    %478 = vmatpush1.msra.mxu0 0.0
    %479 = vmatprep.subr.mxu0 0.0
    %480 = vmatpush1.msra.mxu0 0.0
    %481 = vmatprep.subr.mxu0 0.0
    %482 = vmatpush1.msra.mxu0 0.0
    %483 = vmatprep.subr.mxu0 0.0
    %484 = vmatpush1.msra.mxu0 0.0
    %485 = vmatprep.subr.mxu0 0.0
    %486 = vmatpush1.msra.mxu0 0.0
    %487 = vmatprep.subr.mxu0 0.0
    %488 = vmatpush1.msra.mxu0 0.0
    %489 = vmatprep.subr.mxu0 0.0
    %490 = vmatpush1.msra.mxu0 0.0
    %491 = vmatprep.subr.mxu0 0.0
    %492 = vmatpush1.msra.mxu0 0.0
    %493 = vmatprep.mubr.f32.mxu0 0.0
    %494 = vmatmul.mubr.f32.gmra.mrb[0].mxu0 %v427
    %v495 = vpop.f32.mrb[0].mxu0
    %v496 = vadd.f32 %v424, %v495
    %v497 = vpop.f32.mrb[0].mxu0
    %498 = vdwg.mxu0
    %v499 = vxor.u32 %v496, 2147483648
    %v500 = vmul.f32 %v499, 1.442695
    %v501 = vpow.pop %v500
    %v502 = vadd.f32 %v501, 1.0
    %v503 = vrcp.pop %v502
    %v504 = vmul.f32 1.0, %v503
    %v505 = vmul.f32 %v496, %v504
    %v506 = vld [vmem:[%s2 + $0x148] sm:$0xff]
    %v507 = vsel %vm251, %v322, 0.0
    %508 = vadd.xlane.f32.xlu0 %v507
    %v509 = vpop.xlane.xlu0 %508
    %v510 = vrcp.pop 32.0
    %v511 = vmul.f32 %v509, %v510
    %v512 = vsub.f32 %v322, %v511
    %v513 = vmul.f32 %v512, %v512
    %v514 = vsel %vm251, %v513, 0.0
    %515 = vadd.xlane.f32.xlu0 %v514
    %v516 = vpop.xlane.xlu0 %515
    %v517 = vmul.f32 %v516, %v510
    %v518 = vadd.f32 %v517, 1e-05
    %v519 = vrsqrt.pop %v518
    %v520 = vmul.f32 %v512, %v519
    %v521 = vlaneseq
    %v522 = vshrl.u32 %v521, 7
    %v523 = vsub.s32 0, %v522
    %v524 = vrot.slane %v506, %v523
    %v525 = vmul.f32 %v520, %v524
    %v526 = vlaneseq
    %v527 = vshrl.u32 %v526, 7
    %v528 = vsub.s32 1, %v527
    %v529 = vrot.slane %v506, %v528
    %v530 = vadd.f32 %v525, %v529
    %v531 = vxor.u32 %v530, 2147483648
    %v532 = vmul.f32 %v531, 1.442695
    %v533 = vpow.pop %v532
    %v534 = vadd.f32 %v533, 1.0
    %v535 = vrcp.pop %v534
    %v536 = vmul.f32 1.0, %v535
    %v537 = vmul.f32 %v530, %v536
    %539 = vrot.lane.b32.xlu0 %v505, 32
    %v540 = vpop.permute.xlu0 %539
    %v542 = vsel %vm251, %v537, %v540
    %v543 = vld [vmem:[%s2 + $0xa8] sm:$0xff]
    %v544 = vld [vmem:[%s2 + $0xb0] sm:$0xff]
    %v545 = vld [vmem:[%s2 + $0xb8] sm:$0xff]
    %v546 = vld [vmem:[%s2 + $0xc0] sm:$0xff]
    %v547 = vld [vmem:[%s2 + $0xc8] sm:$0xff]
    %v548 = vld [vmem:[%s2 + $0xd0] sm:$0xff]
    %v549 = vld [vmem:[%s2 + $0xd8] sm:$0xff]
    %v550 = vld [vmem:[%s2 + $0xe0] sm:$0xff]
    %v551 = vld [vmem:[%s2 + $0xe8] sm:$0xff]
    %v552 = vld [vmem:[%s2 + $0xf0] sm:$0xff]
    %v553 = vld [vmem:[%s2 + $0xf8] sm:$0xff]
    %v554 = vld [vmem:[%s2 + $0x100] sm:$0xff]
    %v555 = vlaneseq
    %v556 = vshrl.u32 %v555, 7
    %v557 = vsub.s32 2, %v556
    %v558 = vrot.slane %v506, %v557
    %vm559 = vcmask 785408
    %v561 = vsel %vm559, %v542, 0
    %563 = vmatprep.subr.mxu0 0.0
    %564 = vmatpush1.msra.mxu0 %v543
    %565 = vmatprep.subr.mxu0 0.0
    %566 = vmatpush1.msra.mxu0 %v544
    %567 = vmatprep.subr.mxu0 0.0
    %568 = vmatpush1.msra.mxu0 %v545
    %569 = vmatprep.subr.mxu0 0.0
    %570 = vmatpush1.msra.mxu0 %v546
    %571 = vmatprep.subr.mxu0 0.0
    %572 = vmatpush1.msra.mxu0 %v547
    %573 = vmatprep.subr.mxu0 0.0
    %574 = vmatpush1.msra.mxu0 %v548
    %575 = vmatprep.subr.mxu0 0.0
    %576 = vmatpush1.msra.mxu0 %v549
    %577 = vmatprep.subr.mxu0 0.0
    %578 = vmatpush1.msra.mxu0 %v550
    %579 = vmatprep.subr.mxu0 0.0
    %580 = vmatpush1.msra.mxu0 %v551
    %581 = vmatprep.subr.mxu0 0.0
    %582 = vmatpush1.msra.mxu0 %v552
    %583 = vmatprep.subr.mxu0 0.0
    %584 = vmatpush1.msra.mxu0 %v553
    %585 = vmatprep.subr.mxu0 0.0
    %586 = vmatpush1.msra.mxu0 %v554
    %587 = vmatprep.subr.mxu0 0.0
    %588 = vmatpush1.msra.mxu0 0.0
    %589 = vmatprep.subr.mxu0 0.0
    %590 = vmatpush1.msra.mxu0 0.0
    %591 = vmatprep.subr.mxu0 0.0
    %592 = vmatpush1.msra.mxu0 0.0
    %593 = vmatprep.subr.mxu0 0.0
    %594 = vmatpush1.msra.mxu0 0.0
    %595 = vmatprep.subr.mxu0 0.0
    %596 = vmatpush1.msra.mxu0 0.0
    %597 = vmatprep.subr.mxu0 0.0
    %598 = vmatpush1.msra.mxu0 0.0
    %599 = vmatprep.subr.mxu0 0.0
    %600 = vmatpush1.msra.mxu0 0.0
    %601 = vmatprep.subr.mxu0 0.0
    %602 = vmatpush1.msra.mxu0 0.0
    %603 = vmatprep.subr.mxu0 0.0
    %604 = vmatpush1.msra.mxu0 0.0
    %605 = vmatprep.subr.mxu0 0.0
    %606 = vmatpush1.msra.mxu0 0.0
    %607 = vmatprep.subr.mxu0 0.0
    %608 = vmatpush1.msra.mxu0 0.0
    %609 = vmatprep.subr.mxu0 0.0
    %610 = vmatpush1.msra.mxu0 0.0
    %611 = vmatprep.subr.mxu0 0.0
    %612 = vmatpush1.msra.mxu0 0.0
    %613 = vmatprep.subr.mxu0 0.0
    %614 = vmatpush1.msra.mxu0 0.0
    %615 = vmatprep.subr.mxu0 0.0
    %616 = vmatpush1.msra.mxu0 0.0
    %617 = vmatprep.subr.mxu0 0.0
    %618 = vmatpush1.msra.mxu0 0.0
    %619 = vmatprep.subr.mxu0 0.0
    %620 = vmatpush1.msra.mxu0 0.0
    %621 = vmatprep.subr.mxu0 0.0
    %622 = vmatpush1.msra.mxu0 0.0
    %623 = vmatprep.subr.mxu0 0.0
    %624 = vmatpush1.msra.mxu0 0.0
    %625 = vmatprep.subr.mxu0 0.0
    %626 = vmatpush1.msra.mxu0 0.0
    %627 = vmatprep.mubr.f32.mxu0 0.0
    %628 = vmatmul.mubr.f32.gmra.mrb[0].mxu0 %v561
    %v629 = vpop.f32.mrb[0].mxu0
    %v630 = vadd.f32 %v558, %v629
    %v631 = vpop.f32.mrb[0].mxu0
    %632 = vdwg.mxu0
    %v633 = vsel %vm425, %v630, 0.0
    %634 = vadd.xlane.f32.xlu0 %v633
    %v635 = vpop.xlane.xlu0 %634
    %v636 = vrcp.pop 64.0
    %v637 = vmul.f32 %v635, %v636
    %v638 = vsub.f32 %v630, %v637
    %v639 = vmul.f32 %v638, %v638
    %v640 = vsel %vm425, %v639, 0.0
    %641 = vadd.xlane.f32.xlu0 %v640
    %v642 = vpop.xlane.xlu0 %641
    %v643 = vmul.f32 %v642, %v636
    %v644 = vadd.f32 %v643, 1e-05
    %v645 = vrsqrt.pop %v644
    %v646 = vmul.f32 %v638, %v645
    %v647 = vlaneseq
    %v648 = vshrl.u32 %v647, 7
    %v649 = vsub.s32 3, %v648
    %v650 = vrot.slane %v506, %v649
    %v651 = vmul.f32 %v646, %v650
    %v652 = vlaneseq
    %v653 = vshrl.u32 %v652, 7
    %v654 = vsub.s32 4, %v653
    %v655 = vrot.slane %v506, %v654
    %v656 = vadd.f32 %v651, %v655
    %v657 = vxor.u32 %v656, 2147483648
    %v658 = vmul.f32 %v657, 1.442695
    %v659 = vpow.pop %v658
    %v660 = vadd.f32 %v659, 1.0
    %v661 = vrcp.pop %v660
    %v662 = vmul.f32 1.0, %v661
    %v663 = vmul.f32 %v656, %v662
    %v664 = vld [vmem:[%s2 + $0x108] sm:$0xff]
    %v665 = vld [vmem:[%s2 + $0x110] sm:$0xff]
    %v666 = vld [vmem:[%s2 + $0x118] sm:$0xff]
    %v667 = vld [vmem:[%s2 + $0x120] sm:$0xff]
    %v668 = vld [vmem:[%s2 + $0x128] sm:$0xff]
    %v669 = vld [vmem:[%s2 + $0x130] sm:$0xff]
    %v670 = vld [vmem:[%s2 + $0x138] sm:$0xff]
    %v671 = vld [vmem:[%s2 + $0x140] sm:$0xff]
    %v672 = vlaneseq
    %v673 = vshrl.u32 %v672, 7
    %v674 = vsub.s32 5, %v673
    %v675 = vrot.slane %v506, %v674
    %v677 = vsel %vm425, %v663, 0
    %679 = vmatprep.subr.mxu0 0.0
    %680 = vmatpush1.msra.mxu0 %v664
    %681 = vmatprep.subr.mxu0 0.0
    %682 = vmatpush1.msra.mxu0 %v665
    %683 = vmatprep.subr.mxu0 0.0
    %684 = vmatpush1.msra.mxu0 %v666
    %685 = vmatprep.subr.mxu0 0.0
    %686 = vmatpush1.msra.mxu0 %v667
    %687 = vmatprep.subr.mxu0 0.0
    %688 = vmatpush1.msra.mxu0 %v668
    %689 = vmatprep.subr.mxu0 0.0
    %690 = vmatpush1.msra.mxu0 %v669
    %691 = vmatprep.subr.mxu0 0.0
    %692 = vmatpush1.msra.mxu0 %v670
    %693 = vmatprep.subr.mxu0 0.0
    %694 = vmatpush1.msra.mxu0 %v671
    %695 = vmatprep.subr.mxu0 0.0
    %696 = vmatpush1.msra.mxu0 0.0
    %697 = vmatprep.subr.mxu0 0.0
    %698 = vmatpush1.msra.mxu0 0.0
    %699 = vmatprep.subr.mxu0 0.0
    %700 = vmatpush1.msra.mxu0 0.0
    %701 = vmatprep.subr.mxu0 0.0
    %702 = vmatpush1.msra.mxu0 0.0
    %703 = vmatprep.subr.mxu0 0.0
    %704 = vmatpush1.msra.mxu0 0.0
    %705 = vmatprep.subr.mxu0 0.0
    %706 = vmatpush1.msra.mxu0 0.0
    %707 = vmatprep.subr.mxu0 0.0
    %708 = vmatpush1.msra.mxu0 0.0
    %709 = vmatprep.subr.mxu0 0.0
    %710 = vmatpush1.msra.mxu0 0.0
    %711 = vmatprep.subr.mxu0 0.0
    %712 = vmatpush1.msra.mxu0 0.0
    %713 = vmatprep.subr.mxu0 0.0
    %714 = vmatpush1.msra.mxu0 0.0
    %715 = vmatprep.subr.mxu0 0.0
    %716 = vmatpush1.msra.mxu0 0.0
    %717 = vmatprep.subr.mxu0 0.0
    %718 = vmatpush1.msra.mxu0 0.0
    %719 = vmatprep.subr.mxu0 0.0
    %720 = vmatpush1.msra.mxu0 0.0
    %721 = vmatprep.subr.mxu0 0.0
    %722 = vmatpush1.msra.mxu0 0.0
    %723 = vmatprep.subr.mxu0 0.0
    %724 = vmatpush1.msra.mxu0 0.0
    %725 = vmatprep.subr.mxu0 0.0
    %726 = vmatpush1.msra.mxu0 0.0
    %727 = vmatprep.subr.mxu0 0.0
    %728 = vmatpush1.msra.mxu0 0.0
    %729 = vmatprep.subr.mxu0 0.0
    %730 = vmatpush1.msra.mxu0 0.0
    %731 = vmatprep.subr.mxu0 0.0
    %732 = vmatpush1.msra.mxu0 0.0
    %733 = vmatprep.subr.mxu0 0.0
    %734 = vmatpush1.msra.mxu0 0.0
    %735 = vmatprep.subr.mxu0 0.0
    %736 = vmatpush1.msra.mxu0 0.0
    %737 = vmatprep.subr.mxu0 0.0
    %738 = vmatpush1.msra.mxu0 0.0
    %739 = vmatprep.subr.mxu0 0.0
    %740 = vmatpush1.msra.mxu0 0.0
    %741 = vmatprep.subr.mxu0 0.0
    %742 = vmatpush1.msra.mxu0 0.0
    %743 = vmatprep.mubr.f32.mxu0 0.0
    %744 = vmatmul.mubr.f32.gmra.mrb[0].mxu0 %v677
    %v745 = vpop.f32.mrb[0].mxu0
    %v746 = vadd.f32 %v675, %v745
    %v747 = vpop.f32.mrb[0].mxu0
    %748 = vdwg.mxu0
    %v749 = vadd.f32 %v322, %v746
    %v750 = vld [vmem:[%s2 + $0x1f0] sm:$0xff]
    %v751 = vsel %vm251, %v749, 0.0
    %752 = vadd.xlane.f32.xlu0 %v751
    %v753 = vpop.xlane.xlu0 %752
    %v754 = vmul.f32 %v753, %v510
    %v755 = vsub.f32 %v749, %v754
    %v756 = vmul.f32 %v755, %v755
    %v757 = vsel %vm251, %v756, 0.0
    %758 = vadd.xlane.f32.xlu0 %v757
    %v759 = vpop.xlane.xlu0 %758
    %v760 = vmul.f32 %v759, %v510
    %v761 = vadd.f32 %v760, 1e-05
    %v762 = vrsqrt.pop %v761
    %v763 = vmul.f32 %v755, %v762
    %v764 = vlaneseq
    %v765 = vshrl.u32 %v764, 7
    %v766 = vsub.s32 0, %v765
    %v767 = vrot.slane %v750, %v766
    %v768 = vmul.f32 %v763, %v767
    %v769 = vlaneseq
    %v770 = vshrl.u32 %v769, 7
    %v771 = vsub.s32 1, %v770
    %v772 = vrot.slane %v750, %v771
    %v773 = vadd.f32 %v768, %v772
    %v774 = vxor.u32 %v773, 2147483648
    %v775 = vmul.f32 %v774, 1.442695
    %v776 = vpow.pop %v775
    %v777 = vadd.f32 %v776, 1.0
    %v778 = vrcp.pop %v777
    %v779 = vmul.f32 1.0, %v778
    %v780 = vmul.f32 %v773, %v779
    %v781 = vsel %vm251, %v780, %v540
    %v782 = vld [vmem:[%s2 + $0x150] sm:$0xff]
    %v783 = vld [vmem:[%s2 + $0x158] sm:$0xff]
    %v784 = vld [vmem:[%s2 + $0x160] sm:$0xff]
    %v785 = vld [vmem:[%s2 + $0x168] sm:$0xff]
    %v786 = vld [vmem:[%s2 + $0x170] sm:$0xff]
    %v787 = vld [vmem:[%s2 + $0x178] sm:$0xff]
    %v788 = vld [vmem:[%s2 + $0x180] sm:$0xff]
    %v789 = vld [vmem:[%s2 + $0x188] sm:$0xff]
    %v790 = vld [vmem:[%s2 + $0x190] sm:$0xff]
    %v791 = vld [vmem:[%s2 + $0x198] sm:$0xff]
    %v792 = vld [vmem:[%s2 + $0x1a0] sm:$0xff]
    %v793 = vld [vmem:[%s2 + $0x1a8] sm:$0xff]
    %v794 = vlaneseq
    %v795 = vshrl.u32 %v794, 7
    %v796 = vsub.s32 2, %v795
    %v797 = vrot.slane %v750, %v796
    %v799 = vsel %vm559, %v781, 0
    %801 = vmatprep.subr.mxu0 0.0
    %802 = vmatpush1.msra.mxu0 %v782
    %803 = vmatprep.subr.mxu0 0.0
    %804 = vmatpush1.msra.mxu0 %v783
    %805 = vmatprep.subr.mxu0 0.0
    %806 = vmatpush1.msra.mxu0 %v784
    %807 = vmatprep.subr.mxu0 0.0
    %808 = vmatpush1.msra.mxu0 %v785
    %809 = vmatprep.subr.mxu0 0.0
    %810 = vmatpush1.msra.mxu0 %v786
    %811 = vmatprep.subr.mxu0 0.0
    %812 = vmatpush1.msra.mxu0 %v787
    %813 = vmatprep.subr.mxu0 0.0
    %814 = vmatpush1.msra.mxu0 %v788
    %815 = vmatprep.subr.mxu0 0.0
    %816 = vmatpush1.msra.mxu0 %v789
    %817 = vmatprep.subr.mxu0 0.0
    %818 = vmatpush1.msra.mxu0 %v790
    %819 = vmatprep.subr.mxu0 0.0
    %820 = vmatpush1.msra.mxu0 %v791
    %821 = vmatprep.subr.mxu0 0.0
    %822 = vmatpush1.msra.mxu0 %v792
    %823 = vmatprep.subr.mxu0 0.0
    %824 = vmatpush1.msra.mxu0 %v793
    %825 = vmatprep.subr.mxu0 0.0
    %826 = vmatpush1.msra.mxu0 0.0
    %827 = vmatprep.subr.mxu0 0.0
    %828 = vmatpush1.msra.mxu0 0.0
    %829 = vmatprep.subr.mxu0 0.0
    %830 = vmatpush1.msra.mxu0 0.0
    %831 = vmatprep.subr.mxu0 0.0
    %832 = vmatpush1.msra.mxu0 0.0
    %833 = vmatprep.subr.mxu0 0.0
    %834 = vmatpush1.msra.mxu0 0.0
    %835 = vmatprep.subr.mxu0 0.0
    %836 = vmatpush1.msra.mxu0 0.0
    %837 = vmatprep.subr.mxu0 0.0
    %838 = vmatpush1.msra.mxu0 0.0
    %839 = vmatprep.subr.mxu0 0.0
    %840 = vmatpush1.msra.mxu0 0.0
    %841 = vmatprep.subr.mxu0 0.0
    %842 = vmatpush1.msra.mxu0 0.0
    %843 = vmatprep.subr.mxu0 0.0
    %844 = vmatpush1.msra.mxu0 0.0
    %845 = vmatprep.subr.mxu0 0.0
    %846 = vmatpush1.msra.mxu0 0.0
    %847 = vmatprep.subr.mxu0 0.0
    %848 = vmatpush1.msra.mxu0 0.0
    %849 = vmatprep.subr.mxu0 0.0
    %850 = vmatpush1.msra.mxu0 0.0
    %851 = vmatprep.subr.mxu0 0.0
    %852 = vmatpush1.msra.mxu0 0.0
    %853 = vmatprep.subr.mxu0 0.0
    %854 = vmatpush1.msra.mxu0 0.0
    %855 = vmatprep.subr.mxu0 0.0
    %856 = vmatpush1.msra.mxu0 0.0
    %857 = vmatprep.subr.mxu0 0.0
    %858 = vmatpush1.msra.mxu0 0.0
    %859 = vmatprep.subr.mxu0 0.0
    %860 = vmatpush1.msra.mxu0 0.0
    %861 = vmatprep.subr.mxu0 0.0
    %862 = vmatpush1.msra.mxu0 0.0
    %863 = vmatprep.subr.mxu0 0.0
    %864 = vmatpush1.msra.mxu0 0.0
    %865 = vmatprep.mubr.f32.mxu0 0.0
    %866 = vmatmul.mubr.f32.gmra.mrb[0].mxu0 %v799
    %v867 = vpop.f32.mrb[0].mxu0
    %v868 = vadd.f32 %v797, %v867
    %v869 = vpop.f32.mrb[0].mxu0
    %870 = vdwg.mxu0
    %v871 = vsel %vm425, %v868, 0.0
    %872 = vadd.xlane.f32.xlu0 %v871
    %v873 = vpop.xlane.xlu0 %872
    %v874 = vmul.f32 %v873, %v636
    %v875 = vsub.f32 %v868, %v874
    %v876 = vmul.f32 %v875, %v875
    %v877 = vsel %vm425, %v876, 0.0
    %878 = vadd.xlane.f32.xlu0 %v877
    %v879 = vpop.xlane.xlu0 %878
    %v880 = vmul.f32 %v879, %v636
    %v881 = vadd.f32 %v880, 1e-05
    %v882 = vrsqrt.pop %v881
    %v883 = vmul.f32 %v875, %v882
    %v884 = vlaneseq
    %v885 = vshrl.u32 %v884, 7
    %v886 = vsub.s32 3, %v885
    %v887 = vrot.slane %v750, %v886
    %v888 = vmul.f32 %v883, %v887
    %v889 = vlaneseq
    %v890 = vshrl.u32 %v889, 7
    %v891 = vsub.s32 4, %v890
    %v892 = vrot.slane %v750, %v891
    %v893 = vadd.f32 %v888, %v892
    %v894 = vxor.u32 %v893, 2147483648
    %v895 = vmul.f32 %v894, 1.442695
    %v896 = vpow.pop %v895
    %v897 = vadd.f32 %v896, 1.0
    %v898 = vrcp.pop %v897
    %v899 = vmul.f32 1.0, %v898
    %v900 = vmul.f32 %v893, %v899
    %v901 = vld [vmem:[%s2 + $0x1b0] sm:$0xff]
    %v902 = vld [vmem:[%s2 + $0x1b8] sm:$0xff]
    %v903 = vld [vmem:[%s2 + $0x1c0] sm:$0xff]
    %v904 = vld [vmem:[%s2 + $0x1c8] sm:$0xff]
    %v905 = vld [vmem:[%s2 + $0x1d0] sm:$0xff]
    %v906 = vld [vmem:[%s2 + $0x1d8] sm:$0xff]
    %v907 = vld [vmem:[%s2 + $0x1e0] sm:$0xff]
    %v908 = vld [vmem:[%s2 + $0x1e8] sm:$0xff]
    %v909 = vlaneseq
    %v910 = vshrl.u32 %v909, 7
    %v911 = vsub.s32 5, %v910
    %v912 = vrot.slane %v750, %v911
    %v914 = vsel %vm425, %v900, 0
    %916 = vmatprep.subr.mxu0 0.0
    %917 = vmatpush1.msra.mxu0 %v901
    %918 = vmatprep.subr.mxu0 0.0
    %919 = vmatpush1.msra.mxu0 %v902
    %920 = vmatprep.subr.mxu0 0.0
    %921 = vmatpush1.msra.mxu0 %v903
    %922 = vmatprep.subr.mxu0 0.0
    %923 = vmatpush1.msra.mxu0 %v904
    %924 = vmatprep.subr.mxu0 0.0
    %925 = vmatpush1.msra.mxu0 %v905
    %926 = vmatprep.subr.mxu0 0.0
    %927 = vmatpush1.msra.mxu0 %v906
    %928 = vmatprep.subr.mxu0 0.0
    %929 = vmatpush1.msra.mxu0 %v907
    %930 = vmatprep.subr.mxu0 0.0
    %931 = vmatpush1.msra.mxu0 %v908
    %932 = vmatprep.subr.mxu0 0.0
    %933 = vmatpush1.msra.mxu0 0.0
    %934 = vmatprep.subr.mxu0 0.0
    %935 = vmatpush1.msra.mxu0 0.0
    %936 = vmatprep.subr.mxu0 0.0
    %937 = vmatpush1.msra.mxu0 0.0
    %938 = vmatprep.subr.mxu0 0.0
    %939 = vmatpush1.msra.mxu0 0.0
    %940 = vmatprep.subr.mxu0 0.0
    %941 = vmatpush1.msra.mxu0 0.0
    %942 = vmatprep.subr.mxu0 0.0
    %943 = vmatpush1.msra.mxu0 0.0
    %944 = vmatprep.subr.mxu0 0.0
    %945 = vmatpush1.msra.mxu0 0.0
    %946 = vmatprep.subr.mxu0 0.0
    %947 = vmatpush1.msra.mxu0 0.0
    %948 = vmatprep.subr.mxu0 0.0
    %949 = vmatpush1.msra.mxu0 0.0
    %950 = vmatprep.subr.mxu0 0.0
    %951 = vmatpush1.msra.mxu0 0.0
    %952 = vmatprep.subr.mxu0 0.0
    %953 = vmatpush1.msra.mxu0 0.0
    %954 = vmatprep.subr.mxu0 0.0
    %955 = vmatpush1.msra.mxu0 0.0
    %956 = vmatprep.subr.mxu0 0.0
    %957 = vmatpush1.msra.mxu0 0.0
    %958 = vmatprep.subr.mxu0 0.0
    %959 = vmatpush1.msra.mxu0 0.0
    %960 = vmatprep.subr.mxu0 0.0
    %961 = vmatpush1.msra.mxu0 0.0
    %962 = vmatprep.subr.mxu0 0.0
    %963 = vmatpush1.msra.mxu0 0.0
    %964 = vmatprep.subr.mxu0 0.0
    %965 = vmatpush1.msra.mxu0 0.0
    %966 = vmatprep.subr.mxu0 0.0
    %967 = vmatpush1.msra.mxu0 0.0
    %968 = vmatprep.subr.mxu0 0.0
    %969 = vmatpush1.msra.mxu0 0.0
    %970 = vmatprep.subr.mxu0 0.0
    %971 = vmatpush1.msra.mxu0 0.0
    %972 = vmatprep.subr.mxu0 0.0
    %973 = vmatpush1.msra.mxu0 0.0
    %974 = vmatprep.subr.mxu0 0.0
    %975 = vmatpush1.msra.mxu0 0.0
    %976 = vmatprep.subr.mxu0 0.0
    %977 = vmatpush1.msra.mxu0 0.0
    %978 = vmatprep.subr.mxu0 0.0
    %979 = vmatpush1.msra.mxu0 0.0
    %980 = vmatprep.mubr.f32.mxu0 0.0
    %981 = vmatmul.mubr.f32.gmra.mrb[0].mxu0 %v914
    %v982 = vpop.f32.mrb[0].mxu0
    %v983 = vadd.f32 %v912, %v982
    %v984 = vpop.f32.mrb[0].mxu0
    %985 = vdwg.mxu0
    %v986 = vadd.f32 %v749, %v983
    %v987 = vsel %vm251, %v986, 0.0
    %988 = vadd.xlane.f32.xlu0 %v987
    %v989 = vpop.xlane.xlu0 %988
    %v990 = vmul.f32 %v989, %v510
    %v991 = vsub.f32 %v986, %v990
    %v992 = vmul.f32 %v991, %v991
    %v993 = vsel %vm251, %v992, 0.0
    %994 = vadd.xlane.f32.xlu0 %v993
    %v995 = vpop.xlane.xlu0 %994
    %v996 = vmul.f32 %v995, %v510
    %v997 = vadd.f32 %v996, 1e-06
    %v998 = vrsqrt.pop %v997
    %v999 = vmul.f32 %v991, %v998
    %v1000 = vlaneseq
    %v1001 = vshrl.u32 %v1000, 7
    %v1002 = vsub.s32 3, %v1001
    %v1003 = vrot.slane %v15, %v1002
    %v1004 = vmul.f32 %v999, %v1003
    %v1005 = vlaneseq
    %v1006 = vshrl.u32 %v1005, 7
    %v1007 = vsub.s32 4, %v1006
    %v1008 = vrot.slane %v15, %v1007
    %v1009 = vadd.f32 %v1004, %v1008
    %v1010 = vxor.u32 %v1009, 2147483648
    %v1011 = vmul.f32 %v1010, 1.442695
    %v1012 = vpow.pop %v1011
    %v1013 = vadd.f32 %v1012, 1.0
    %v1014 = vrcp.pop %v1013
    %v1015 = vmul.f32 1.0, %v1014
    %v1016 = vmul.f32 %v1009, %v1015
    %v1017 = vld [vmem:[%s2 + $0x80] sm:$0xff]
    %v1018 = vld [vmem:[%s2 + $0x88] sm:$0xff]
    %v1019 = vld [vmem:[%s2 + $0x90] sm:$0xff]
    %v1020 = vld [vmem:[%s2 + $0x98] sm:$0xff]
    %v1021 = vlaneseq
    %v1022 = vshrl.u32 %v1021, 7
    %v1023 = vsub.s32 5, %v1022
    %v1024 = vrot.slane %v15, %v1023
    %v1026 = vsel %vm251, %v1016, 0
    %1028 = vmatprep.subr.mxu0 0.0
    %1029 = vmatpush1.msra.mxu0 %v1017
    %1030 = vmatprep.subr.mxu0 0.0
    %1031 = vmatpush1.msra.mxu0 %v1018
    %1032 = vmatprep.subr.mxu0 0.0
    %1033 = vmatpush1.msra.mxu0 %v1019
    %1034 = vmatprep.subr.mxu0 0.0
    %1035 = vmatpush1.msra.mxu0 %v1020
    %1036 = vmatprep.subr.mxu0 0.0
    %1037 = vmatpush1.msra.mxu0 0.0
    %1038 = vmatprep.subr.mxu0 0.0
    %1039 = vmatpush1.msra.mxu0 0.0
    %1040 = vmatprep.subr.mxu0 0.0
    %1041 = vmatpush1.msra.mxu0 0.0
    %1042 = vmatprep.subr.mxu0 0.0
    %1043 = vmatpush1.msra.mxu0 0.0
    %1044 = vmatprep.subr.mxu0 0.0
    %1045 = vmatpush1.msra.mxu0 0.0
    %1046 = vmatprep.subr.mxu0 0.0
    %1047 = vmatpush1.msra.mxu0 0.0
    %1048 = vmatprep.subr.mxu0 0.0
    %1049 = vmatpush1.msra.mxu0 0.0
    %1050 = vmatprep.subr.mxu0 0.0
    %1051 = vmatpush1.msra.mxu0 0.0
    %1052 = vmatprep.subr.mxu0 0.0
    %1053 = vmatpush1.msra.mxu0 0.0
    %1054 = vmatprep.subr.mxu0 0.0
    %1055 = vmatpush1.msra.mxu0 0.0
    %1056 = vmatprep.subr.mxu0 0.0
    %1057 = vmatpush1.msra.mxu0 0.0
    %1058 = vmatprep.subr.mxu0 0.0
    %1059 = vmatpush1.msra.mxu0 0.0
    %1060 = vmatprep.subr.mxu0 0.0
    %1061 = vmatpush1.msra.mxu0 0.0
    %1062 = vmatprep.subr.mxu0 0.0
    %1063 = vmatpush1.msra.mxu0 0.0
    %1064 = vmatprep.subr.mxu0 0.0
    %1065 = vmatpush1.msra.mxu0 0.0
    %1066 = vmatprep.subr.mxu0 0.0
    %1067 = vmatpush1.msra.mxu0 0.0
    %1068 = vmatprep.subr.mxu0 0.0
    %1069 = vmatpush1.msra.mxu0 0.0
    %1070 = vmatprep.subr.mxu0 0.0
    %1071 = vmatpush1.msra.mxu0 0.0
    %1072 = vmatprep.subr.mxu0 0.0
    %1073 = vmatpush1.msra.mxu0 0.0
    %1074 = vmatprep.subr.mxu0 0.0
    %1075 = vmatpush1.msra.mxu0 0.0
    %1076 = vmatprep.subr.mxu0 0.0
    %1077 = vmatpush1.msra.mxu0 0.0
    %1078 = vmatprep.subr.mxu0 0.0
    %1079 = vmatpush1.msra.mxu0 0.0
    %1080 = vmatprep.subr.mxu0 0.0
    %1081 = vmatpush1.msra.mxu0 0.0
    %1082 = vmatprep.subr.mxu0 0.0
    %1083 = vmatpush1.msra.mxu0 0.0
    %1084 = vmatprep.subr.mxu0 0.0
    %1085 = vmatpush1.msra.mxu0 0.0
    %1086 = vmatprep.subr.mxu0 0.0
    %1087 = vmatpush1.msra.mxu0 0.0
    %1088 = vmatprep.subr.mxu0 0.0
    %1089 = vmatpush1.msra.mxu0 0.0
    %1090 = vmatprep.subr.mxu0 0.0
    %1091 = vmatpush1.msra.mxu0 0.0
    %1092 = vmatprep.mubr.f32.mxu0 0.0
    %1093 = vmatmul.mubr.f32.gmra.mrb[0].mxu0 %v1026
    %v1094 = vpop.f32.mrb[0].mxu0
    %v1095 = vadd.f32 %v1024, %v1094
    %v1096 = vpop.f32.mrb[0].mxu0
    %1097 = vdwg.mxu0
    %1098 = vst.msk [vmem:[#allocation2] sm:$0xff] %vm251, %v1095
    // Predicated region
    $region14: #{tpu_custom_call.1} parent=1 // pred_check
      _
    $region15: #{tpu_custom_call.1} parent=1 // pred_check_branch
      %1100 = sbr.rel (0) target = $region17
    $region16: #{tpu_custom_call.1} parent=1 // pred_region
      %s1102 = ssub.s32 128, 128
      %1103 = vsyncadd [#allocation3], %s1102
      %s1105 = sshll.u32 [#allocation2], 4
      %s1106 = int_to_ptr.vmem [resolvable:$true] %s1105
      %1108 = dma.vmem_to_hbm [thread:$0]  %s1106, 128, %s3, [#allocation3]
    $region17: #{tpu_custom_call.1} parent=1 // pred_fallthru
      _
    // Predicated region
    $region18: #{tpu_custom_call.1} parent=1 // pred_check
      _
    $region19: #{tpu_custom_call.1} parent=1 // pred_check_branch
      %1110 = sbr.rel (0) target = $region21
    $region20: #{tpu_custom_call.1} parent=1 // pred_region
      %1111 = dma.done [#allocation3], 128
    $region21: #{tpu_custom_call.1} parent=1 // pred_fallthru
      _
    %1112 = vsyncpa [#allocation3], 1

</llo_original>
